<compile_context>
chip_gen: v7x
topology: tpu7x:2x2x1
jax: 0.10.0
libtpu: 0.0.40
codegen_flags: <defaults>
</compile_context>

<pallas_src>
import numpy as np
import jax
import jax.numpy as jnp
from jax.experimental import pallas as pl
from jax.experimental.pallas import tpu as pltpu


def decoder_seq_kernel(enc_ref, s0_ref,
                       wa_s_ref, wa_e_ref, v_ref,
                       wx3_ref, wh3_ref, bx3_ref, bhn_ref,
                       wfc_h_ref, wfc_c_ref, bfc_ref,
                       out_ref, hid_ref,
                       pe_ref):
    """One decode timestep. grid = (batch_tiles, app_len), time axis innermost.

    hid_ref (output, constant block index over t) doubles as the recurrent-state carry.
    out_ref (output, constant block index over t) holds the whole (TB, T, Ppad) slab and is
    written back to HBM once per batch tile. pe_ref caches W_e @ enc_output (time-invariant)
    once per batch tile, stored in the compute dtype.
    """
    t = pl.program_id(1)
    TB, L, E2 = enc_ref.shape
    H = hid_ref.shape[1]
    cdt = enc_ref.dtype                                  # matmul / energy compute dtype

    @pl.when(t == 0)
    def _init():
        hid_ref[...] = s0_ref[...]                       # recurrent carry <- encoder state
        # flattened 2-D matmul instead of a broadcasted batched matmul; cached in cdt
        pe_ref[...] = jnp.dot(enc_ref[...].reshape(TB * L, E2), wa_e_ref[...],
                              preferred_element_type=jnp.float32
                              ).reshape(TB, L, H).astype(pe_ref.dtype)

    s = hid_ref[...]                                     # [TB, H] f32

    # ---- additive attention: a = softmax_L( v . tanh(W_s s + W_e enc) ) ----
    proj_s = jnp.dot(s.astype(cdt), wa_s_ref[...],
                     preferred_element_type=jnp.float32)                  # [TB, H] f32
    energy = jnp.tanh(pe_ref[...] + proj_s.astype(pe_ref.dtype)[:, None, :])  # [TB,L,H] cdt
    # score reduction as an MXU matvec (idle unit) instead of VPU mul + XLU lane reduce
    scores = jnp.dot(energy.reshape(TB * L, H), v_ref[...],
                     preferred_element_type=jnp.float32).reshape(TB, L)   # [TB, L] f32
    m = jnp.max(scores, axis=-1, keepdims=True)
    e = jnp.exp(scores - m)
    a = e / jnp.sum(e, axis=-1, keepdims=True)                            # [TB, L] f32

    # ---- context: VPU weighted sum + sublane reduce (avoids M=1 batched MXU matmul) ----
    c = jnp.sum(a[:, :, None] * enc_ref[...].astype(jnp.float32), axis=1)  # [TB, E2] f32

    # ---- single-step GRU (PyTorch gate order r,z,n); 6 matmuls fused into 2 ----
    # bx3 already holds (b_ih + b_hh) for the r,z gates and b_ih for the n gate;
    # only the n-gate hidden bias is added separately (inside r*(...)).
    gx = jnp.dot(c.astype(cdt), wx3_ref[...],
                 preferred_element_type=jnp.float32) + bx3_ref[...]       # [TB, 3H]
    gh = jnp.dot(s.astype(cdt), wh3_ref[...],
                 preferred_element_type=jnp.float32)                      # [TB, 3H]
    r = jax.nn.sigmoid(gx[:, 0:H] + gh[:, 0:H])
    z = jax.nn.sigmoid(gx[:, H:2 * H] + gh[:, H:2 * H])
    n = jnp.tanh(gx[:, 2 * H:] + r * (gh[:, 2 * H:] + bhn_ref[...]))
    h_new = (1.0 - z) * n + z * s                                         # [TB, H] f32

    # ---- pred = fc_out(cat(dec_output, c)); output columns lane-padded to 128 ----
    pred = (jnp.dot(h_new.astype(cdt), wfc_h_ref[...],
                    preferred_element_type=jnp.float32)
            + jnp.dot(c.astype(cdt), wfc_c_ref[...],
                      preferred_element_type=jnp.float32)
            + bfc_ref[...])                                               # [TB, Ppad]

    hid_ref[...] = h_new
    out_ref[:, pl.ds(t, 1), :] = pred[:, None, :].astype(out_ref.dtype)


def seq2seq_decode_forward(enc_output, s0, kp, app_len, power_dis_dim, *,
                           batch_tile=None, compute_dtype=jnp.float32,
                           vmem_limit_bytes=None):
    """Runs the full decode loop in one pallas_call.  Returns (outputs[B,T,P], final_s[B,H])."""
    B, L, E2 = enc_output.shape
    H = s0.shape[1]
    Ppad = kp['bfc'].shape[1]
    T = int(app_len)

    if batch_tile is None:
        # Prefer >=2 batch tiles (each a multiple of 8 rows) so the "parallel" batch axis can
        # shard across both TensorCores on v7x; with small B fall back to a single tile.
        TB = B // 2 if (B % 16 == 0) else B
    else:
        TB = int(batch_tile)
    assert B % TB == 0 and (TB == B or TB % 8 == 0), \
        "batch tile must divide B and be either B or a multiple of 8"
    nb = B // TB

    cdt = compute_dtype
    enc_c = enc_output.astype(cdt)          # bf16 halves enc HBM->VMEM traffic when enabled
    s0_f = s0.astype(jnp.float32)

    def w(x):                               # matmul operands in the MXU compute dtype
        return x.astype(cdt)

    args = (enc_c, s0_f,
            w(kp['wa_s']), w(kp['wa_e']), w(kp['v_col']),
            w(kp['wx3']), w(kp['wh3']),
            kp['bx3'].astype(jnp.float32), kp['bhn'].astype(jnp.float32),
            w(kp['wfc_h']), w(kp['wfc_c']), kp['bfc'].astype(jnp.float32))

    def resident(shape):                    # constant block index -> fetched once, stays in VMEM
        return pl.BlockSpec(shape, lambda b, t: (0,) * len(shape))

    in_specs = [
        pl.BlockSpec((TB, L, E2), lambda b, t: (b, 0, 0)),     # enc_output tile per batch block
        pl.BlockSpec((TB, H), lambda b, t: (b, 0)),            # initial hidden state
    ] + [resident(a.shape) for a in args[2:]]

    out_specs = (
        # (B, T, Ppad) layout written directly by the kernel (no wrapper transpose); the
        # block is resident over t and written back lane-dense once per batch tile.
        pl.BlockSpec((TB, T, Ppad), lambda b, t: (b, 0, 0)),
        pl.BlockSpec((TB, H), lambda b, t: (b, 0)),            # recurrent carry / final s
    )
    out_shape = (jax.ShapeDtypeStruct((B, T, Ppad), jnp.float32),
                 jax.ShapeDtypeStruct((B, H), jnp.float32))

    cp_kwargs = dict(dimension_semantics=("parallel", "arbitrary"))
    if vmem_limit_bytes is not None:        # size explicitly for v7x's smaller (64 MiB) VMEM
        cp_kwargs["vmem_limit_bytes"] = int(vmem_limit_bytes)
    else:
        # Rough VMEM estimate; raise the default scoped limit (32 MiB, 16 MiB on v5e) only
        # when the working set actually needs it (no-op at small shapes).
        csz = jnp.dtype(cdt).itemsize
        est = (2 * TB * L * E2 * csz                       # double-buffered enc tile
               + TB * L * H * csz                          # pe scratch
               + 2 * (TB * T * Ppad + TB * H) * 4          # double-buffered outputs
               + sum(int(np.prod(a.shape)) * a.dtype.itemsize for a in args[2:])
               + (1 << 20))
        if est > (32 << 20):
            cp_kwargs["vmem_limit_bytes"] = min(int(est * 1.25), 112 << 20)

    outs, hid = pl.pallas_call(
        decoder_seq_kernel,
        grid=(nb, T),
        in_specs=in_specs,
        out_specs=out_specs,
        out_shape=out_shape,
        scratch_shapes=[pltpu.VMEM((TB, L, H), cdt)],   # cached W_e @ enc_output (compute dtype)
        compiler_params=pltpu.CompilerParams(**cp_kwargs),
    )(*args)

    # slice off the fc_out lane padding
    return outs[:, :, :power_dis_dim], hid


def make_params(key, enc_hid, dec_hid, power_dis_dim):
    E2, H, P = 2 * enc_hid, dec_hid, power_dis_dim
    Ppad = ((P + 127) // 128) * 128
    ks = jax.random.split(key, 8)

    def uni(k, shape, bound):
        return jax.random.uniform(k, shape, jnp.float32, -bound, bound)

    # raw (PyTorch-convention) parameters
    W_attn = uni(ks[0], (H, H + E2), 1.0 / np.sqrt(H + E2))   # attn: Linear(H+E2 -> H, no bias)
    V_attn = uni(ks[1], (1, H), 1.0 / np.sqrt(H))             # v: Linear(H -> 1, no bias)
    kg = 1.0 / np.sqrt(H)
    W_ih = uni(ks[2], (3 * H, E2), kg)                        # GRU weight_ih_l0 (rows r|z|n)
    W_hh = uni(ks[3], (3 * H, H), kg)                         # GRU weight_hh_l0
    b_ih = uni(ks[4], (3 * H,), kg)
    b_hh = uni(ks[5], (3 * H,), kg)
    kf = 1.0 / np.sqrt(E2 + H)
    W_fc = uni(ks[6], (P, E2 + H), kf)                        # fc_out weight
    b_fc = uni(ks[7], (P,), kf)

    raw = dict(W_attn=W_attn, V_attn=V_attn, W_ih=W_ih, W_hh=W_hh,
               b_ih=b_ih, b_hh=b_hh, W_fc=W_fc, b_fc=b_fc)

    def pad_last(x, n):
        return jnp.pad(x, ((0, 0), (0, n - x.shape[-1])))

    # kernel-friendly: (in_features, out_features) layout, GRU gate weights fused,
    # r/z biases pre-summed (b_ih + b_hh), n-gate hidden bias kept separate,
    # fc_out output dimension zero-padded to a multiple of 128 lanes.
    kp = dict(
        wa_s=W_attn[:, :H].T,                     # [H, H]
        wa_e=W_attn[:, H:].T,                     # [E2, H]
        v_col=V_attn.T,                           # [H, 1] column for the MXU score matvec
        wx3=W_ih.T,                               # [E2, 3H]  columns ordered r|z|n
        wh3=W_hh.T,                               # [H, 3H]
        bx3=jnp.concatenate([b_ih[:2 * H] + b_hh[:2 * H],
                             b_ih[2 * H:]]).reshape(1, 3 * H),
        bhn=b_hh[2 * H:].reshape(1, H),           # n-gate hidden bias (inside r * (...))
        wfc_h=pad_last(W_fc[:, :H].T, Ppad),      # [H, Ppad]
        wfc_c=pad_last(W_fc[:, H:].T, Ppad),      # [E2, Ppad]
        bfc=pad_last(b_fc.reshape(1, P), Ppad),   # [1, Ppad]
    )
    return raw, kp


def reference_forward(enc, s, raw, app_len):
    """Pure-JAX mirror of Seq2Seq_Pytorch.forward after the encoder (decode loop)."""
    B, L, E2 = enc.shape
    H = s.shape[1]
    preds = []
    for _ in range(app_len):
        s_rep = jnp.broadcast_to(s[:, None, :], (B, L, H))
        energy = jnp.tanh(jnp.concatenate([s_rep, enc], axis=2) @ raw['W_attn'].T)
        scores = (energy @ raw['V_attn'].T)[..., 0]                 # [B, L]
        a = jax.nn.softmax(scores, axis=1)
        c = jnp.einsum('bl,ble->be', a, enc)
        gx = c @ raw['W_ih'].T + raw['b_ih']
        gh = s @ raw['W_hh'].T + raw['b_hh']
        r = jax.nn.sigmoid(gx[:, :H] + gh[:, :H])
        z = jax.nn.sigmoid(gx[:, H:2 * H] + gh[:, H:2 * H])
        n = jnp.tanh(gx[:, 2 * H:] + r * gh[:, 2 * H:])
        s = (1.0 - z) * n + z * s
        pred = jnp.concatenate([s, c], axis=1) @ raw['W_fc'].T + raw['b_fc']
        preds.append(pred)
    return jnp.stack(preds, axis=1), s


if __name__ == "__main__":
    B, L, APP_LEN = 2, 8, 6
    ENC_HID, DEC_HID, POWER_DIS_DIM = 16, 32, 10
    E2, H = 2 * ENC_HID, DEC_HID

    key = jax.random.PRNGKey(0)
    k_enc, k_s, k_par = jax.random.split(key, 3)
    enc_output = jax.random.normal(k_enc, (B, L, E2), jnp.float32)
    s0 = jax.random.normal(k_s, (B, H), jnp.float32)

    raw, kp = make_params(k_par, ENC_HID, DEC_HID, POWER_DIS_DIM)

    # True-f32 reference (matches PyTorch CPU numerics).
    with jax.default_matmul_precision("float32"):
        outs_ref, hid_ref_val = reference_forward(enc_output, s0, raw, APP_LEN)
        outs_ref, hid_ref_val = jax.block_until_ready((outs_ref, hid_ref_val))

    # f32 MXU-operand path.
    outs, hid = seq2seq_decode_forward(enc_output, s0, kp, APP_LEN, POWER_DIS_DIM)
    jax.block_until_ready((outs, hid))
    assert outs.shape == (B, APP_LEN, POWER_DIS_DIM) and hid.shape == (B, H)
    np.testing.assert_allclose(np.asarray(outs), np.asarray(outs_ref), rtol=1e-3, atol=2e-3)
    np.testing.assert_allclose(np.asarray(hid), np.asarray(hid_ref_val), rtol=1e-3, atol=2e-3)

    # bf16 MXU-operand path (recommended production config on v6e/v7x); softmax / gates /
    # GRU state remain f32 inside the kernel, accumulation is f32.
    # Note: bf16 recurrence error can compound for long app_len; validated here at T=6.
    outs_bf, hid_bf = seq2seq_decode_forward(enc_output, s0, kp, APP_LEN, POWER_DIS_DIM,
                                             compute_dtype=jnp.bfloat16)
    jax.block_until_ready((outs_bf, hid_bf))
    np.testing.assert_allclose(np.asarray(outs_bf), np.asarray(outs_ref), rtol=5e-2, atol=5e-2)
    np.testing.assert_allclose(np.asarray(hid_bf), np.asarray(hid_ref_val), rtol=5e-2, atol=5e-2)

    print("KERNEL_OK")
</pallas_src>

<mosaic_0001>
module attributes {stable_mosaic.version = 11 : i64} {
  func.func @decoder_seq_kernel(%arg0: i32, %arg1: i32, %arg2: memref<2x8x32xf32, #tpu.memory_space<vmem>>, %arg3: memref<2x32xf32, #tpu.memory_space<vmem>>, %arg4: memref<32x32xf32, #tpu.memory_space<vmem>>, %arg5: memref<32x32xf32, #tpu.memory_space<vmem>>, %arg6: memref<32x1xf32, #tpu.memory_space<vmem>>, %arg7: memref<32x96xf32, #tpu.memory_space<vmem>>, %arg8: memref<32x96xf32, #tpu.memory_space<vmem>>, %arg9: memref<1x96xf32, #tpu.memory_space<vmem>>, %arg10: memref<1x32xf32, #tpu.memory_space<vmem>>, %arg11: memref<32x128xf32, #tpu.memory_space<vmem>>, %arg12: memref<32x128xf32, #tpu.memory_space<vmem>>, %arg13: memref<1x128xf32, #tpu.memory_space<vmem>>, %arg14: memref<2x6x128xf32, #tpu.memory_space<vmem>>, %arg15: memref<2x32xf32, #tpu.memory_space<vmem>>, %arg16: memref<2x8x32xf32, #tpu.memory_space<vmem>>) attributes {dimension_semantics = [#tpu.dimension_semantics<parallel>, #tpu.dimension_semantics<arbitrary>], iteration_bounds = array<i64: 1, 6>, scalar_prefetch = 0 : i64, scratch_operands = 1 : i64, tpu.core_type = #tpu.core_type<tc>, window_params = [{transform_indices = @transform_0, window_bounds = array<i64: 2, 8, 32>}, {transform_indices = @transform_1, window_bounds = array<i64: 2, 32>}, {pipeline_mode = #tpu.pipeline_mode<synchronous>, transform_indices = @transform_2, window_bounds = array<i64: 32, 32>}, {pipeline_mode = #tpu.pipeline_mode<synchronous>, transform_indices = @transform_3, window_bounds = array<i64: 32, 32>}, {pipeline_mode = #tpu.pipeline_mode<synchronous>, transform_indices = @transform_4, window_bounds = array<i64: 32, 1>}, {pipeline_mode = #tpu.pipeline_mode<synchronous>, transform_indices = @transform_5, window_bounds = array<i64: 32, 96>}, {pipeline_mode = #tpu.pipeline_mode<synchronous>, transform_indices = @transform_6, window_bounds = array<i64: 32, 96>}, {pipeline_mode = #tpu.pipeline_mode<synchronous>, transform_indices = @transform_7, window_bounds = array<i64: 1, 96>}, {pipeline_mode = #tpu.pipeline_mode<synchronous>, transform_indices = @transform_8, window_bounds = array<i64: 1, 32>}, {pipeline_mode = #tpu.pipeline_mode<synchronous>, transform_indices = @transform_9, window_bounds = array<i64: 32, 128>}, {pipeline_mode = #tpu.pipeline_mode<synchronous>, transform_indices = @transform_10, window_bounds = array<i64: 32, 128>}, {pipeline_mode = #tpu.pipeline_mode<synchronous>, transform_indices = @transform_11, window_bounds = array<i64: 1, 128>}, {transform_indices = @transform_12, window_bounds = array<i64: 2, 6, 128>}, {transform_indices = @transform_13, window_bounds = array<i64: 2, 32>}]} {
    %c0_i32 = arith.constant 0 : i32
    %0 = arith.cmpi eq, %arg1, %c0_i32 : i32
    %1 = arith.extui %0 : i1 to i32
    %c0_i32_0 = arith.constant 0 : i32
    %2 = arith.cmpi ne, %1, %c0_i32_0 : i32
    scf.if %2 {
      %c0_41 = arith.constant 0 : index
      %c0_42 = arith.constant 0 : index
      %77 = vector.load %arg3[%c0_41, %c0_42] : memref<2x32xf32, #tpu.memory_space<vmem>>, vector<2x32xf32>
      %c0_43 = arith.constant 0 : index
      %c0_44 = arith.constant 0 : index
      %78 = vector.load %arg15[%c0_43, %c0_44] : memref<2x32xf32, #tpu.memory_space<vmem>>, vector<2x32xf32>
      tpu.vector_store %arg15[%c0_43, %c0_44], %77 {strides = array<i32>} : memref<2x32xf32, #tpu.memory_space<vmem>>, vector<2x32xf32>,
      %c0_45 = arith.constant 0 : index
      %c0_46 = arith.constant 0 : index
      %c0_47 = arith.constant 0 : index
      %79 = vector.load %arg2[%c0_45, %c0_46, %c0_47] : memref<2x8x32xf32, #tpu.memory_space<vmem>>, vector<2x8x32xf32>
      %80 = vector.shape_cast %79 : vector<2x8x32xf32> to vector<16x32xf32>
      %c0_48 = arith.constant 0 : index
      %c0_49 = arith.constant 0 : index
      %81 = vector.load %arg5[%c0_48, %c0_49] : memref<32x32xf32, #tpu.memory_space<vmem>>, vector<32x32xf32>
      %cst_50 = arith.constant dense<0.000000e+00> : vector<16x32xf32>
      %82 = tpu.matmul %80, %81, %cst_50 {dimension_numbers = #tpu.dot_dimension_numbers<[1], [0], [0], [1], [0, 0, 1, 1], [], []>} : vector<16x32xf32>, vector<32x32xf32>, vector<16x32xf32> -> vector<16x32xf32>
      %83 = vector.shape_cast %82 : vector<16x32xf32> to vector<2x8x32xf32>
      %c0_51 = arith.constant 0 : index
      %c0_52 = arith.constant 0 : index
      %c0_53 = arith.constant 0 : index
      %84 = vector.load %arg16[%c0_51, %c0_52, %c0_53] : memref<2x8x32xf32, #tpu.memory_space<vmem>>, vector<2x8x32xf32>
      tpu.vector_store %arg16[%c0_51, %c0_52, %c0_53], %83 {strides = array<i32>} : memref<2x8x32xf32, #tpu.memory_space<vmem>>, vector<2x8x32xf32>,
    } else {
    }
    %c0 = arith.constant 0 : index
    %c0_1 = arith.constant 0 : index
    %3 = vector.load %arg15[%c0, %c0_1] : memref<2x32xf32, #tpu.memory_space<vmem>>, vector<2x32xf32>
    %c0_2 = arith.constant 0 : index
    %c0_3 = arith.constant 0 : index
    %4 = vector.load %arg4[%c0_2, %c0_3] : memref<32x32xf32, #tpu.memory_space<vmem>>, vector<32x32xf32>
    %cst = arith.constant dense<0.000000e+00> : vector<2x32xf32>
    %5 = tpu.matmul %3, %4, %cst {dimension_numbers = #tpu.dot_dimension_numbers<[1], [0], [0], [1], [0, 0, 1, 1], [], []>} : vector<2x32xf32>, vector<32x32xf32>, vector<2x32xf32> -> vector<2x32xf32>
    %c0_4 = arith.constant 0 : index
    %c0_5 = arith.constant 0 : index
    %c0_6 = arith.constant 0 : index
    %6 = vector.load %arg16[%c0_4, %c0_5, %c0_6] : memref<2x8x32xf32, #tpu.memory_space<vmem>>, vector<2x8x32xf32>
    %7 = vector.shape_cast %5 : vector<2x32xf32> to vector<2x1x32xf32>
    %8 = vector.broadcast %7 : vector<2x1x32xf32> to vector<2x8x32xf32>
    %9 = arith.addf %6, %8 : vector<2x8x32xf32>
    %10 = math.tanh %9 : vector<2x8x32xf32>
    %11 = vector.shape_cast %10 : vector<2x8x32xf32> to vector<16x32xf32>
    %c0_7 = arith.constant 0 : index
    %c0_8 = arith.constant 0 : index
    %12 = vector.load %arg6[%c0_7, %c0_8] : memref<32x1xf32, #tpu.memory_space<vmem>>, vector<32x1xf32>
    %cst_9 = arith.constant dense<0.000000e+00> : vector<16x1xf32>
    %13 = tpu.matmul %11, %12, %cst_9 {dimension_numbers = #tpu.dot_dimension_numbers<[1], [0], [0], [1], [0, 0, 1, 1], [], []>} : vector<16x32xf32>, vector<32x1xf32>, vector<16x1xf32> -> vector<16x1xf32>
    %14 = vector.shape_cast %13 : vector<16x1xf32> to vector<2x8xf32>
    %cst_10 = arith.constant dense<0xFF800000> : vector<2xf32>
    %15 = vector.multi_reduction <maximumf>, %14, %cst_10 [1] : vector<2x8xf32> to vector<2xf32>
    %16 = vector.shape_cast %15 : vector<2xf32> to vector<2x1xf32>
    %17 = vector.broadcast %16 : vector<2x1xf32> to vector<2x8xf32>
    %18 = arith.subf %14, %17 : vector<2x8xf32>
    %19 = math.exp %18 : vector<2x8xf32>
    %cst_11 = arith.constant dense<0.000000e+00> : vector<2xf32>
    %20 = vector.multi_reduction <add>, %19, %cst_11 [1] : vector<2x8xf32> to vector<2xf32>
    %21 = vector.shape_cast %20 : vector<2xf32> to vector<2x1xf32>
    %22 = vector.broadcast %21 : vector<2x1xf32> to vector<2x8xf32>
    %23 = arith.divf %19, %22 : vector<2x8xf32>
    %24 = vector.shape_cast %23 : vector<2x8xf32> to vector<2x8x1xf32>
    %c0_12 = arith.constant 0 : index
    %c0_13 = arith.constant 0 : index
    %c0_14 = arith.constant 0 : index
    %25 = vector.load %arg2[%c0_12, %c0_13, %c0_14] : memref<2x8x32xf32, #tpu.memory_space<vmem>>, vector<2x8x32xf32>
    %26 = vector.broadcast %24 : vector<2x8x1xf32> to vector<2x8x32xf32>
    %27 = arith.mulf %26, %25 : vector<2x8x32xf32>
    %cst_15 = arith.constant dense<0.000000e+00> : vector<2x32xf32>
    %28 = vector.multi_reduction <add>, %27, %cst_15 [1] : vector<2x8x32xf32> to vector<2x32xf32>
    %c0_16 = arith.constant 0 : index
    %c0_17 = arith.constant 0 : index
    %29 = vector.load %arg7[%c0_16, %c0_17] : memref<32x96xf32, #tpu.memory_space<vmem>>, vector<32x96xf32>
    %cst_18 = arith.constant dense<0.000000e+00> : vector<2x96xf32>
    %30 = tpu.matmul %28, %29, %cst_18 {dimension_numbers = #tpu.dot_dimension_numbers<[1], [0], [0], [1], [0, 0, 1, 1], [], []>} : vector<2x32xf32>, vector<32x96xf32>, vector<2x96xf32> -> vector<2x96xf32>
    %c0_19 = arith.constant 0 : index
    %c0_20 = arith.constant 0 : index
    %31 = vector.load %arg9[%c0_19, %c0_20] : memref<1x96xf32, #tpu.memory_space<vmem>>, vector<1x96xf32>
    %32 = vector.broadcast %31 : vector<1x96xf32> to vector<2x96xf32>
    %33 = arith.addf %30, %32 : vector<2x96xf32>
    %c0_21 = arith.constant 0 : index
    %c0_22 = arith.constant 0 : index
    %34 = vector.load %arg8[%c0_21, %c0_22] : memref<32x96xf32, #tpu.memory_space<vmem>>, vector<32x96xf32>
    %cst_23 = arith.constant dense<0.000000e+00> : vector<2x96xf32>
    %35 = tpu.matmul %3, %34, %cst_23 {dimension_numbers = #tpu.dot_dimension_numbers<[1], [0], [0], [1], [0, 0, 1, 1], [], []>} : vector<2x32xf32>, vector<32x96xf32>, vector<2x96xf32> -> vector<2x96xf32>
    %36 = vector.extract_strided_slice %33 {offsets = [0, 0], sizes = [2, 32], strides = [1, 1]} : vector<2x96xf32> to vector<2x32xf32>
    %37 = vector.extract_strided_slice %35 {offsets = [0, 0], sizes = [2, 32], strides = [1, 1]} : vector<2x96xf32> to vector<2x32xf32>
    %38 = arith.addf %36, %37 : vector<2x32xf32>
    %39 = arith.negf %38 : vector<2x32xf32>
    %40 = math.exp %39 : vector<2x32xf32>
    %cst_24 = arith.constant 1.000000e+00 : f32
    %41 = vector.broadcast %cst_24 : f32 to vector<2x32xf32>
    %42 = arith.addf %41, %40 : vector<2x32xf32>
    %43 = arith.divf %41, %42 : vector<2x32xf32>
    %44 = vector.extract_strided_slice %33 {offsets = [0, 32], sizes = [2, 32], strides = [1, 1]} : vector<2x96xf32> to vector<2x32xf32>
    %45 = vector.extract_strided_slice %35 {offsets = [0, 32], sizes = [2, 32], strides = [1, 1]} : vector<2x96xf32> to vector<2x32xf32>
    %46 = arith.addf %44, %45 : vector<2x32xf32>
    %47 = arith.negf %46 : vector<2x32xf32>
    %48 = math.exp %47 : vector<2x32xf32>
    %cst_25 = arith.constant 1.000000e+00 : f32
    %49 = vector.broadcast %cst_25 : f32 to vector<2x32xf32>
    %50 = arith.addf %49, %48 : vector<2x32xf32>
    %51 = arith.divf %49, %50 : vector<2x32xf32>
    %52 = vector.extract_strided_slice %33 {offsets = [0, 64], sizes = [2, 32], strides = [1, 1]} : vector<2x96xf32> to vector<2x32xf32>
    %53 = vector.extract_strided_slice %35 {offsets = [0, 64], sizes = [2, 32], strides = [1, 1]} : vector<2x96xf32> to vector<2x32xf32>
    %c0_26 = arith.constant 0 : index
    %c0_27 = arith.constant 0 : index
    %54 = vector.load %arg10[%c0_26, %c0_27] : memref<1x32xf32, #tpu.memory_space<vmem>>, vector<1x32xf32>
    %55 = vector.broadcast %54 : vector<1x32xf32> to vector<2x32xf32>
    %56 = arith.addf %53, %55 : vector<2x32xf32>
    %57 = arith.mulf %43, %56 : vector<2x32xf32>
    %58 = arith.addf %52, %57 : vector<2x32xf32>
    %59 = math.tanh %58 : vector<2x32xf32>
    %cst_28 = arith.constant 1.000000e+00 : f32
    %60 = vector.broadcast %cst_28 : f32 to vector<2x32xf32>
    %61 = arith.subf %60, %51 : vector<2x32xf32>
    %62 = arith.mulf %61, %59 : vector<2x32xf32>
    %63 = arith.mulf %51, %3 : vector<2x32xf32>
    %64 = arith.addf %62, %63 : vector<2x32xf32>
    %c0_29 = arith.constant 0 : index
    %c0_30 = arith.constant 0 : index
    %65 = vector.load %arg11[%c0_29, %c0_30] : memref<32x128xf32, #tpu.memory_space<vmem>>, vector<32x128xf32>
    %cst_31 = arith.constant dense<0.000000e+00> : vector<2x128xf32>
    %66 = tpu.matmul %64, %65, %cst_31 {dimension_numbers = #tpu.dot_dimension_numbers<[1], [0], [0], [1], [0, 0, 1, 1], [], []>} : vector<2x32xf32>, vector<32x128xf32>, vector<2x128xf32> -> vector<2x128xf32>
    %c0_32 = arith.constant 0 : index
    %c0_33 = arith.constant 0 : index
    %67 = vector.load %arg12[%c0_32, %c0_33] : memref<32x128xf32, #tpu.memory_space<vmem>>, vector<32x128xf32>
    %cst_34 = arith.constant dense<0.000000e+00> : vector<2x128xf32>
    %68 = tpu.matmul %28, %67, %cst_34 {dimension_numbers = #tpu.dot_dimension_numbers<[1], [0], [0], [1], [0, 0, 1, 1], [], []>} : vector<2x32xf32>, vector<32x128xf32>, vector<2x128xf32> -> vector<2x128xf32>
    %69 = arith.addf %66, %68 : vector<2x128xf32>
    %c0_35 = arith.constant 0 : index
    %c0_36 = arith.constant 0 : index
    %70 = vector.load %arg13[%c0_35, %c0_36] : memref<1x128xf32, #tpu.memory_space<vmem>>, vector<1x128xf32>
    %71 = vector.broadcast %70 : vector<1x128xf32> to vector<2x128xf32>
    %72 = arith.addf %69, %71 : vector<2x128xf32>
    %c0_37 = arith.constant 0 : index
    %c0_38 = arith.constant 0 : index
    %73 = vector.load %arg15[%c0_37, %c0_38] : memref<2x32xf32, #tpu.memory_space<vmem>>, vector<2x32xf32>
    tpu.vector_store %arg15[%c0_37, %c0_38], %64 {strides = array<i32>} : memref<2x32xf32, #tpu.memory_space<vmem>>, vector<2x32xf32>,
    %74 = vector.shape_cast %72 : vector<2x128xf32> to vector<2x1x128xf32>
    %c0_39 = arith.constant 0 : index
    %75 = arith.index_cast %arg1 : i32 to index
    %c0_40 = arith.constant 0 : index
    %76 = vector.load %arg14[%c0_39, %75, %c0_40] : memref<2x6x128xf32, #tpu.memory_space<vmem>>, vector<2x1x128xf32>
    tpu.vector_store %arg14[%c0_39, %75, %c0_40], %74 {strides = array<i32>} : memref<2x6x128xf32, #tpu.memory_space<vmem>>, vector<2x1x128xf32>,
    return
  }
  func.func @transform_0(%arg0: i32, %arg1: i32) -> (i32, i32, i32) {
    %c0_i32 = arith.constant 0 : i32
    %c0_i32_0 = arith.constant 0 : i32
    %c0_i32_1 = arith.constant 0 : i32
    return %arg0, %c0_i32, %c0_i32_0 : i32, i32, i32
  }
  func.func @transform_1(%arg0: i32, %arg1: i32) -> (i32, i32) {
    %c0_i32 = arith.constant 0 : i32
    %c0_i32_0 = arith.constant 0 : i32
    return %arg0, %c0_i32 : i32, i32
  }
  func.func @transform_2(%arg0: i32, %arg1: i32) -> (i32, i32) {
    %c0_i32 = arith.constant 0 : i32
    %c0_i32_0 = arith.constant 0 : i32
    %c0_i32_1 = arith.constant 0 : i32
    return %c0_i32, %c0_i32_0 : i32, i32
  }
  func.func @transform_3(%arg0: i32, %arg1: i32) -> (i32, i32) {
    %c0_i32 = arith.constant 0 : i32
    %c0_i32_0 = arith.constant 0 : i32
    %c0_i32_1 = arith.constant 0 : i32
    return %c0_i32, %c0_i32_0 : i32, i32
  }
  func.func @transform_4(%arg0: i32, %arg1: i32) -> (i32, i32) {
    %c0_i32 = arith.constant 0 : i32
    %c0_i32_0 = arith.constant 0 : i32
    %c0_i32_1 = arith.constant 0 : i32
    return %c0_i32, %c0_i32_0 : i32, i32
  }
  func.func @transform_5(%arg0: i32, %arg1: i32) -> (i32, i32) {
    %c0_i32 = arith.constant 0 : i32
    %c0_i32_0 = arith.constant 0 : i32
    %c0_i32_1 = arith.constant 0 : i32
    return %c0_i32, %c0_i32_0 : i32, i32
  }
  func.func @transform_6(%arg0: i32, %arg1: i32) -> (i32, i32) {
    %c0_i32 = arith.constant 0 : i32
    %c0_i32_0 = arith.constant 0 : i32
    %c0_i32_1 = arith.constant 0 : i32
    return %c0_i32, %c0_i32_0 : i32, i32
  }
  func.func @transform_7(%arg0: i32, %arg1: i32) -> (i32, i32) {
    %c0_i32 = arith.constant 0 : i32
    %c0_i32_0 = arith.constant 0 : i32
    %c0_i32_1 = arith.constant 0 : i32
    return %c0_i32, %c0_i32_0 : i32, i32
  }
  func.func @transform_8(%arg0: i32, %arg1: i32) -> (i32, i32) {
    %c0_i32 = arith.constant 0 : i32
    %c0_i32_0 = arith.constant 0 : i32
    %c0_i32_1 = arith.constant 0 : i32
    return %c0_i32, %c0_i32_0 : i32, i32
  }
  func.func @transform_9(%arg0: i32, %arg1: i32) -> (i32, i32) {
    %c0_i32 = arith.constant 0 : i32
    %c0_i32_0 = arith.constant 0 : i32
    %c0_i32_1 = arith.constant 0 : i32
    return %c0_i32, %c0_i32_0 : i32, i32
  }
  func.func @transform_10(%arg0: i32, %arg1: i32) -> (i32, i32) {
    %c0_i32 = arith.constant 0 : i32
    %c0_i32_0 = arith.constant 0 : i32
    %c0_i32_1 = arith.constant 0 : i32
    return %c0_i32, %c0_i32_0 : i32, i32
  }
  func.func @transform_11(%arg0: i32, %arg1: i32) -> (i32, i32) {
    %c0_i32 = arith.constant 0 : i32
    %c0_i32_0 = arith.constant 0 : i32
    %c0_i32_1 = arith.constant 0 : i32
    return %c0_i32, %c0_i32_0 : i32, i32
  }
  func.func @transform_12(%arg0: i32, %arg1: i32) -> (i32, i32, i32) {
    %c0_i32 = arith.constant 0 : i32
    %c0_i32_0 = arith.constant 0 : i32
    %c0_i32_1 = arith.constant 0 : i32
    return %arg0, %c0_i32, %c0_i32_0 : i32, i32, i32
  }
  func.func @transform_13(%arg0: i32, %arg1: i32) -> (i32, i32) {
    %c0_i32 = arith.constant 0 : i32
    %c0_i32_0 = arith.constant 0 : i32
    return %arg0, %c0_i32 : i32, i32
  }
}

</mosaic_0001>

<llo_original>
// kernel: tpu_custom_call.1
$region0: #{tpu_custom_call.1}
  #allocation0 [shape = 'u32[]', space=smem, size = 0x4, offset = 0x4, fixed_abs, tag = 'smem constant byte address 0x4 - core index']
  #allocation1 [shape = 'u32[144,128]{1,0:T(1,128)}', space=vmem, size = 0x12000, scoped, tag = 'internal scratch']
  #allocation2 [shape = 'f32[2,8,32]{2,1,0:T(8,128)}', space=vmem, size = 0x2000, scoped, tag = 'scratch operand']
  %s0 = inlined_call_operand.hbm [shape: f32[2,8,32], index: 0, kind: input, shape index: {}]
  %s1 = inlined_call_operand.vmem [shape: f32[2,32], index: 1, kind: input, shape index: {}]
  %s2 = inlined_call_operand.vmem [shape: f32[32,32], index: 2, kind: input, shape index: {}]
  %s3 = inlined_call_operand.hbm [shape: f32[32,32], index: 3, kind: input, shape index: {}]
  %s4 = inlined_call_operand.vmem [shape: f32[32,1], index: 4, kind: input, shape index: {}]
  %s5 = inlined_call_operand.hbm [shape: f32[32,96], index: 5, kind: input, shape index: {}]
  %s6 = inlined_call_operand.hbm [shape: f32[32,96], index: 6, kind: input, shape index: {}]
  %s7 = inlined_call_operand.vmem [shape: f32[1,96], index: 7, kind: input, shape index: {}]
  %s8 = inlined_call_operand.hbm [shape: f32[1,32], index: 8, kind: input, shape index: {}]
  %s9 = inlined_call_operand.vmem [shape: f32[32,128], index: 9, kind: input, shape index: {}]
  %s10 = inlined_call_operand.hbm [shape: f32[32,128], index: 10, kind: input, shape index: {}]
  %s11 = inlined_call_operand.vmem [shape: f32[1,128], index: 11, kind: input, shape index: {}]
  %s12 = inlined_call_operand.vmem [shape: f32[2,6,128], index: 12, kind: output, shape index: {0}]
  %s13 = inlined_call_operand.hbm [shape: f32[2,32], index: 13, kind: output, shape index: {1}]
  %14 = xla_tuple %s12, %s13
  %s15 = sld [smem:[#allocation0]]
  $region117: #{tpu_custom_call.1} parent=0
    _
  %s17 = ssub.s32 1, %s15
  %s18 = scalar_select 0, %s17, %s15
  $region1: #{tpu_custom_call.1} parent=0
    #allocation3 [shape = 'u8[8192]{0}', space=vmem, size = 0x2000, scoped, tag = 'input window, operand 0, single buffered']
    #allocation4 [shape = 's32[2]{0}', space=sflag, size = 0x8, scoped, tag = 'scoped memory for tpu_custom_call.1']
    #allocation5 [shape = 's32[2]{0}', space=sflag, size = 0x8, scoped, tag = 'scoped memory for tpu_custom_call.1']
    #allocation6 [shape = 'u8[16384]{0}', space=vmem, size = 0x4000, scoped, tag = 'input window, operand 3, single buffered']
    #allocation7 [shape = 's32[1]{0}', space=sflag, size = 0x4, scoped, tag = 'scoped memory for tpu_custom_call.1']
    #allocation8 [shape = 'u8[16384]{0}', space=vmem, size = 0x4000, scoped, tag = 'input window, operand 5, single buffered']
    #allocation9 [shape = 'u8[16384]{0}', space=vmem, size = 0x4000, scoped, tag = 'input window, operand 6, single buffered']
    #allocation10 [shape = 's32[1]{0}', space=sflag, size = 0x4, scoped, tag = 'scoped memory for tpu_custom_call.1']
    #allocation11 [shape = 'u8[512]{0}', space=vmem, size = 0x400, scoped, tag = 'input window, operand 8, single buffered']
    #allocation12 [shape = 'u8[16384]{0}', space=vmem, size = 0x4000, scoped, tag = 'input window, operand 10, single buffered']
    #allocation13 [shape = 's32[1]{0}', space=sflag, size = 0x4, scoped, tag = 'scoped memory for tpu_custom_call.1']
    #allocation14 [shape = 'u8[1024]{0}', space=vmem, size = 0x400, scoped, tag = 'output window, operand 1, single buffered']
    %19 = vsyncpa [#allocation4], 0
    %20 = vsyncpa [#allocation7], 0
    %21 = vsyncpa [#allocation10], 0
    %22 = vsyncpa [#allocation13], 0
    %23 = vsyncpa [#allocation5], 0
    loop: start=0, step=1, limit=8
    $region2: #{tpu_custom_call.1} parent=1 // loop_pre_header
      _
    $region3: #{tpu_custom_call.1} parent=1 // loop_header
      %s25 = sphi 0, %s29
      %p26 = scmp.ge.s32.totalorder %s25, 8
      %s32 = sphi 0, %s44
      %s33 = sphi 0, %s40
      %s34 = sphi 0, %s32
      %s35 = sphi 0, %s33
      %s36 = sphi 0, %s34
      %s37 = sphi 0, %s35
      %s47 = sphi 0, %s49
      %s50 = sphi 0, %s47
      %s51 = sphi 0, %s50
      %s67 = sphi 0, %s51
      %s73 = sphi 0, %s75
      %s76 = sphi 0, %s73
      %s77 = sphi 0, %s76
      %s93 = sphi 0, %s77
      %s97 = sphi 0, %s97
      %s99 = sphi 0, %s97
      %s100 = sphi 0, %s99
      %s114 = sphi 0, %s100
      %s118 = sphi 0, %s118
      %s120 = sphi 0, %s118
      %s121 = sphi 0, %s120
      %s135 = sphi 0, %s121
      %s139 = sphi 0, %s139
      %s141 = sphi 0, %s139
      %s142 = sphi 0, %s141
      %s156 = sphi 0, %s142
      %s160 = sphi 0, %s160
      %s162 = sphi 0, %s160
      %s163 = sphi 0, %s162
      %s177 = sphi 0, %s163
      %s181 = sphi 0, %s181
      %s183 = sphi 0, %s181
      %s184 = sphi 0, %s183
      %s198 = sphi 0, %s184
      %s202 = sphi 0, %s202
      %s204 = sphi 0, %s202
      %s205 = sphi 0, %s204
      %s219 = sphi 0, %s205
      %s223 = sphi 0, %s223
      %s225 = sphi 0, %s223
      %s226 = sphi 0, %s225
      %s240 = sphi 0, %s226
      %s244 = sphi 0, %s244
      %s246 = sphi 0, %s244
      %s247 = sphi 0, %s246
      %s261 = sphi 0, %s247
      %s265 = sphi 0, %s265
      %s267 = sphi 0, %s265
      %s268 = sphi 0, %s267
      %s282 = sphi 0, %s268
      %s286 = sphi 0, %s286
      %s288 = sphi 0, %s286
      %s289 = sphi 0, %s288
      %s303 = sphi 0, %s289
      %s309 = sphi 0, %s311
      %s312 = sphi 0, %s309
      %s313 = sphi 0, %s312
      %s329 = sphi 0, %s313
      %s335 = sphi 0, %s337
      %s338 = sphi 0, %s335
      %s339 = sphi 0, %s338
      %s355 = sphi 0, %s339
    $region4: #{tpu_custom_call.1} parent=1 // loop_header_branch
      %28 = sbr.rel (%p26) target = $region8
    $region5: #{tpu_custom_call.1} parent=1 // loop_body
      %s30 = ssub.s32 %s25, 1
      %s31 = ssub.s32 %s25, 2
      %s38 = sadd.s32 1, %s33
      %p39 = scmp.ge.s32.totalorder %s38, 6
      %s40 = scalar_select %p39, 0, %s38
      %s41 = sadd.s32 1, %s32
      %s42 = scalar_select %p39, %s41, %s32
      %p43 = scmp.ge.s32.totalorder %s42, 1
      %s44 = scalar_select %p43, 0, %s42
      %s45 = ssub.s32 %s32, %s44
      %p46 = scmp.eq.s32.totalorder %s45, 0
      %s48 = sadd.s32 %s47, 1
      %s49 = scalar_select %p46, %s47, %s48
      %p52 = pneg %p46
      %p53 = scmp.eq.s32.totalorder %s25, 5
      %p54 = por %p52, %p53
      %p55 = scmp.ne.s32.totalorder %s47, %s50
      %p56 = scmp.eq.s32.totalorder %s25, 0
      %p57 = por %p55, %p56
      %p58 = scmp.ne.s32.totalorder %s47, %s50
      %p59 = scmp.eq.s32.totalorder %s30, 5
      %p60 = por %p58, %p59
      %p61 = scmp.ne.s32.totalorder %s50, %s51
      %p62 = scmp.eq.s32.totalorder %s30, 0
      %p63 = por %p61, %p62
      %p64 = scmp.ne.s32.totalorder %s50, %s51
      %p65 = scmp.eq.s32.totalorder %s31, 5
      %p66 = por %p64, %p65
      %p68 = scmp.ne.s32.totalorder %s51, %s67
      %p69 = scmp.eq.s32.totalorder %s31, 0
      %p70 = por %p68, %p69
      %s71 = ssub.s32 %s32, %s44
      %p72 = scmp.eq.s32.totalorder %s71, 0
      %s74 = sadd.s32 %s73, 1
      %s75 = scalar_select %p72, %s73, %s74
      %p78 = pneg %p72
      %p79 = scmp.eq.s32.totalorder %s25, 5
      %p80 = por %p78, %p79
      %p81 = scmp.ne.s32.totalorder %s73, %s76
      %p82 = scmp.eq.s32.totalorder %s25, 0
      %p83 = por %p81, %p82
      %p84 = scmp.ne.s32.totalorder %s73, %s76
      %p85 = scmp.eq.s32.totalorder %s30, 5
      %p86 = por %p84, %p85
      %p87 = scmp.ne.s32.totalorder %s76, %s77
      %p88 = scmp.eq.s32.totalorder %s30, 0
      %p89 = por %p87, %p88
      %p90 = scmp.ne.s32.totalorder %s76, %s77
      %p91 = scmp.eq.s32.totalorder %s31, 5
      %p92 = por %p90, %p91
      %p94 = scmp.ne.s32.totalorder %s77, %s93
      %p95 = scmp.eq.s32.totalorder %s31, 0
      %p96 = por %p94, %p95
      %s98 = sadd.s32 %s97, 1
      %p101 = scmp.eq.s32.totalorder %s25, 5
      %p102 = scmp.ne.s32.totalorder %s97, %s99
      %p103 = scmp.eq.s32.totalorder %s25, 0
      %p104 = por %p102, %p103
      %p105 = scmp.ne.s32.totalorder %s97, %s99
      %p106 = scmp.eq.s32.totalorder %s30, 5
      %p107 = por %p105, %p106
      %p108 = scmp.ne.s32.totalorder %s99, %s100
      %p109 = scmp.eq.s32.totalorder %s30, 0
      %p110 = por %p108, %p109
      %p111 = scmp.ne.s32.totalorder %s99, %s100
      %p112 = scmp.eq.s32.totalorder %s31, 5
      %p113 = por %p111, %p112
      %p115 = scmp.ne.s32.totalorder %s100, %s114
      %p116 = scmp.eq.s32.totalorder %s31, 0
      %p117 = por %p115, %p116
      %s119 = sadd.s32 %s118, 1
      %p122 = scmp.eq.s32.totalorder %s25, 5
      %p123 = scmp.ne.s32.totalorder %s118, %s120
      %p124 = scmp.eq.s32.totalorder %s25, 0
      %p125 = por %p123, %p124
      %p126 = scmp.ne.s32.totalorder %s118, %s120
      %p127 = scmp.eq.s32.totalorder %s30, 5
      %p128 = por %p126, %p127
      %p129 = scmp.ne.s32.totalorder %s120, %s121
      %p130 = scmp.eq.s32.totalorder %s30, 0
      %p131 = por %p129, %p130
      %p132 = scmp.ne.s32.totalorder %s120, %s121
      %p133 = scmp.eq.s32.totalorder %s31, 5
      %p134 = por %p132, %p133
      %p136 = scmp.ne.s32.totalorder %s121, %s135
      %p137 = scmp.eq.s32.totalorder %s31, 0
      %p138 = por %p136, %p137
      %s140 = sadd.s32 %s139, 1
      %p143 = scmp.eq.s32.totalorder %s25, 5
      %p144 = scmp.ne.s32.totalorder %s139, %s141
      %p145 = scmp.eq.s32.totalorder %s25, 0
      %p146 = por %p144, %p145
      %p147 = scmp.ne.s32.totalorder %s139, %s141
      %p148 = scmp.eq.s32.totalorder %s30, 5
      %p149 = por %p147, %p148
      %p150 = scmp.ne.s32.totalorder %s141, %s142
      %p151 = scmp.eq.s32.totalorder %s30, 0
      %p152 = por %p150, %p151
      %p153 = scmp.ne.s32.totalorder %s141, %s142
      %p154 = scmp.eq.s32.totalorder %s31, 5
      %p155 = por %p153, %p154
      %p157 = scmp.ne.s32.totalorder %s142, %s156
      %p158 = scmp.eq.s32.totalorder %s31, 0
      %p159 = por %p157, %p158
      %s161 = sadd.s32 %s160, 1
      %p164 = scmp.eq.s32.totalorder %s25, 5
      %p165 = scmp.ne.s32.totalorder %s160, %s162
      %p166 = scmp.eq.s32.totalorder %s25, 0
      %p167 = por %p165, %p166
      %p168 = scmp.ne.s32.totalorder %s160, %s162
      %p169 = scmp.eq.s32.totalorder %s30, 5
      %p170 = por %p168, %p169
      %p171 = scmp.ne.s32.totalorder %s162, %s163
      %p172 = scmp.eq.s32.totalorder %s30, 0
      %p173 = por %p171, %p172
      %p174 = scmp.ne.s32.totalorder %s162, %s163
      %p175 = scmp.eq.s32.totalorder %s31, 5
      %p176 = por %p174, %p175
      %p178 = scmp.ne.s32.totalorder %s163, %s177
      %p179 = scmp.eq.s32.totalorder %s31, 0
      %p180 = por %p178, %p179
      %s182 = sadd.s32 %s181, 1
      %p185 = scmp.eq.s32.totalorder %s25, 5
      %p186 = scmp.ne.s32.totalorder %s181, %s183
      %p187 = scmp.eq.s32.totalorder %s25, 0
      %p188 = por %p186, %p187
      %p189 = scmp.ne.s32.totalorder %s181, %s183
      %p190 = scmp.eq.s32.totalorder %s30, 5
      %p191 = por %p189, %p190
      %p192 = scmp.ne.s32.totalorder %s183, %s184
      %p193 = scmp.eq.s32.totalorder %s30, 0
      %p194 = por %p192, %p193
      %p195 = scmp.ne.s32.totalorder %s183, %s184
      %p196 = scmp.eq.s32.totalorder %s31, 5
      %p197 = por %p195, %p196
      %p199 = scmp.ne.s32.totalorder %s184, %s198
      %p200 = scmp.eq.s32.totalorder %s31, 0
      %p201 = por %p199, %p200
      %s203 = sadd.s32 %s202, 1
      %p206 = scmp.eq.s32.totalorder %s25, 5
      %p207 = scmp.ne.s32.totalorder %s202, %s204
      %p208 = scmp.eq.s32.totalorder %s25, 0
      %p209 = por %p207, %p208
      %p210 = scmp.ne.s32.totalorder %s202, %s204
      %p211 = scmp.eq.s32.totalorder %s30, 5
      %p212 = por %p210, %p211
      %p213 = scmp.ne.s32.totalorder %s204, %s205
      %p214 = scmp.eq.s32.totalorder %s30, 0
      %p215 = por %p213, %p214
      %p216 = scmp.ne.s32.totalorder %s204, %s205
      %p217 = scmp.eq.s32.totalorder %s31, 5
      %p218 = por %p216, %p217
      %p220 = scmp.ne.s32.totalorder %s205, %s219
      %p221 = scmp.eq.s32.totalorder %s31, 0
      %p222 = por %p220, %p221
      %s224 = sadd.s32 %s223, 1
      %p227 = scmp.eq.s32.totalorder %s25, 5
      %p228 = scmp.ne.s32.totalorder %s223, %s225
      %p229 = scmp.eq.s32.totalorder %s25, 0
      %p230 = por %p228, %p229
      %p231 = scmp.ne.s32.totalorder %s223, %s225
      %p232 = scmp.eq.s32.totalorder %s30, 5
      %p233 = por %p231, %p232
      %p234 = scmp.ne.s32.totalorder %s225, %s226
      %p235 = scmp.eq.s32.totalorder %s30, 0
      %p236 = por %p234, %p235
      %p237 = scmp.ne.s32.totalorder %s225, %s226
      %p238 = scmp.eq.s32.totalorder %s31, 5
      %p239 = por %p237, %p238
      %p241 = scmp.ne.s32.totalorder %s226, %s240
      %p242 = scmp.eq.s32.totalorder %s31, 0
      %p243 = por %p241, %p242
      %s245 = sadd.s32 %s244, 1
      %p248 = scmp.eq.s32.totalorder %s25, 5
      %p249 = scmp.ne.s32.totalorder %s244, %s246
      %p250 = scmp.eq.s32.totalorder %s25, 0
      %p251 = por %p249, %p250
      %p252 = scmp.ne.s32.totalorder %s244, %s246
      %p253 = scmp.eq.s32.totalorder %s30, 5
      %p254 = por %p252, %p253
      %p255 = scmp.ne.s32.totalorder %s246, %s247
      %p256 = scmp.eq.s32.totalorder %s30, 0
      %p257 = por %p255, %p256
      %p258 = scmp.ne.s32.totalorder %s246, %s247
      %p259 = scmp.eq.s32.totalorder %s31, 5
      %p260 = por %p258, %p259
      %p262 = scmp.ne.s32.totalorder %s247, %s261
      %p263 = scmp.eq.s32.totalorder %s31, 0
      %p264 = por %p262, %p263
      %s266 = sadd.s32 %s265, 1
      %p269 = scmp.eq.s32.totalorder %s25, 5
      %p270 = scmp.ne.s32.totalorder %s265, %s267
      %p271 = scmp.eq.s32.totalorder %s25, 0
      %p272 = por %p270, %p271
      %p273 = scmp.ne.s32.totalorder %s265, %s267
      %p274 = scmp.eq.s32.totalorder %s30, 5
      %p275 = por %p273, %p274
      %p276 = scmp.ne.s32.totalorder %s267, %s268
      %p277 = scmp.eq.s32.totalorder %s30, 0
      %p278 = por %p276, %p277
      %p279 = scmp.ne.s32.totalorder %s267, %s268
      %p280 = scmp.eq.s32.totalorder %s31, 5
      %p281 = por %p279, %p280
      %p283 = scmp.ne.s32.totalorder %s268, %s282
      %p284 = scmp.eq.s32.totalorder %s31, 0
      %p285 = por %p283, %p284
      %s287 = sadd.s32 %s286, 1
      %p290 = scmp.eq.s32.totalorder %s25, 5
      %p291 = scmp.ne.s32.totalorder %s286, %s288
      %p292 = scmp.eq.s32.totalorder %s25, 0
      %p293 = por %p291, %p292
      %p294 = scmp.ne.s32.totalorder %s286, %s288
      %p295 = scmp.eq.s32.totalorder %s30, 5
      %p296 = por %p294, %p295
      %p297 = scmp.ne.s32.totalorder %s288, %s289
      %p298 = scmp.eq.s32.totalorder %s30, 0
      %p299 = por %p297, %p298
      %p300 = scmp.ne.s32.totalorder %s288, %s289
      %p301 = scmp.eq.s32.totalorder %s31, 5
      %p302 = por %p300, %p301
      %p304 = scmp.ne.s32.totalorder %s289, %s303
      %p305 = scmp.eq.s32.totalorder %s31, 0
      %p306 = por %p304, %p305
      %s307 = ssub.s32 %s32, %s44
      %p308 = scmp.eq.s32.totalorder %s307, 0
      %s310 = sadd.s32 %s309, 1
      %s311 = scalar_select %p308, %s309, %s310
      %p314 = pneg %p308
      %p315 = scmp.eq.s32.totalorder %s25, 5
      %p316 = por %p314, %p315
      %p317 = scmp.ne.s32.totalorder %s309, %s312
      %p318 = scmp.eq.s32.totalorder %s25, 0
      %p319 = por %p317, %p318
      %p320 = scmp.ne.s32.totalorder %s309, %s312
      %p321 = scmp.eq.s32.totalorder %s30, 5
      %p322 = por %p320, %p321
      %p323 = scmp.ne.s32.totalorder %s312, %s313
      %p324 = scmp.eq.s32.totalorder %s30, 0
      %p325 = por %p323, %p324
      %p326 = scmp.ne.s32.totalorder %s312, %s313
      %p327 = scmp.eq.s32.totalorder %s31, 5
      %p328 = por %p326, %p327
      %p330 = scmp.ne.s32.totalorder %s313, %s329
      %p331 = scmp.eq.s32.totalorder %s31, 0
      %p332 = por %p330, %p331
      %s333 = ssub.s32 %s32, %s44
      %p334 = scmp.eq.s32.totalorder %s333, 0
      %s336 = sadd.s32 %s335, 1
      %s337 = scalar_select %p334, %s335, %s336
      %p340 = pneg %p334
      %p341 = scmp.eq.s32.totalorder %s25, 5
      %p342 = por %p340, %p341
      %p343 = scmp.ne.s32.totalorder %s335, %s338
      %p344 = scmp.eq.s32.totalorder %s25, 0
      %p345 = por %p343, %p344
      %p346 = scmp.ne.s32.totalorder %s335, %s338
      %p347 = scmp.eq.s32.totalorder %s30, 5
      %p348 = por %p346, %p347
      %p349 = scmp.ne.s32.totalorder %s338, %s339
      %p350 = scmp.eq.s32.totalorder %s30, 0
      %p351 = por %p349, %p350
      %p352 = scmp.ne.s32.totalorder %s338, %s339
      %p353 = scmp.eq.s32.totalorder %s31, 5
      %p354 = por %p352, %p353
      %p356 = scmp.ne.s32.totalorder %s339, %s355
      %p357 = scmp.eq.s32.totalorder %s31, 0
      %p358 = por %p356, %p357
      %p359 = scmp.le.s32.totalorder 1, %s25
      %p360 = scmp.lt.s32.totalorder %s25, 7
      %p361 = pnand %p359, %p360
      %p362 = pneg %p361
      // Predicated region
      $region9: #{tpu_custom_call.1} parent=5 // pred_check
        _
      $region10: #{tpu_custom_call.1} parent=5 // pred_check_branch
        %364 = sbr.rel (%p361) target = $region12
      $region11: #{tpu_custom_call.1} parent=5 // pred_region
        %s365 = ssub.s32 %s25, 1
        // Predicated region
        $region13: #{tpu_custom_call.1} parent=11 // pred_check
          %p366 = pneg %p63
        $region14: #{tpu_custom_call.1} parent=11 // pred_check_branch
          %368 = sbr.rel (%p366) target = $region16
        $region15: #{tpu_custom_call.1} parent=11 // pred_region
          %s369 = smul.u32 2, %s34
          %s371 = ssub.s32 256, 256
          %372 = vsyncadd [#allocation4], %s371
          %s373 = smul.addr %s369, 128
          %s374 = scalar_lea.hbm %s0, %s373
          %s375 = sshll.u32 [#allocation3], 4
          %s376 = int_to_ptr.vmem [resolvable:$true] %s375
          %381 = dma.hbm_to_vmem [thread:$0]  %s374, 256, %s376, [#allocation4], 128, 128, 8
        $region16: #{tpu_custom_call.1} parent=11 // pred_fallthru
          _
        // Predicated region
        $region17: #{tpu_custom_call.1} parent=11 // pred_check
          %p382 = pneg %p89
        $region18: #{tpu_custom_call.1} parent=11 // pred_check_branch
          %384 = sbr.rel (%p382) target = $region20
        $region19: #{tpu_custom_call.1} parent=11 // pred_region
          %p385 = scmp.lt.s32.totalorder %s34, 0
          %s386 = scalar_select %p385, %s34, 0
          %s387 = smul.addr %s386, 2
          %s388 = scalar_lea.vmem %s1, %s387
        $region20: #{tpu_custom_call.1} parent=11 // pred_fallthru
          _
        // Predicated region
        $region21: #{tpu_custom_call.1} parent=11 // pred_check
          %p389 = pneg %p110
        $region22: #{tpu_custom_call.1} parent=11 // pred_check_branch
          %391 = sbr.rel (%p389) target = $region24
        $region23: #{tpu_custom_call.1} parent=11 // pred_region
          _
        $region24: #{tpu_custom_call.1} parent=11 // pred_fallthru
          _
        // Predicated region
        $region25: #{tpu_custom_call.1} parent=11 // pred_check
          %p392 = pneg %p131
        $region26: #{tpu_custom_call.1} parent=11 // pred_check_branch
          %394 = sbr.rel (%p392) target = $region28
        $region27: #{tpu_custom_call.1} parent=11 // pred_region
          %s396 = ssub.s32 512, 512
          %397 = vsyncadd [#allocation7], %s396
          %s398 = sshll.u32 [#allocation6], 4
          %s399 = int_to_ptr.vmem [resolvable:$true] %s398
          %404 = dma.hbm_to_vmem [thread:$0]  %s3, 512, %s399, [#allocation7], 128, 128, 8
        $region28: #{tpu_custom_call.1} parent=11 // pred_fallthru
          _
        // Predicated region
        $region29: #{tpu_custom_call.1} parent=11 // pred_check
          %p405 = pneg %p152
        $region30: #{tpu_custom_call.1} parent=11 // pred_check_branch
          %407 = sbr.rel (%p405) target = $region32
        $region31: #{tpu_custom_call.1} parent=11 // pred_region
          _
        $region32: #{tpu_custom_call.1} parent=11 // pred_fallthru
          _
        // Predicated region
        $region33: #{tpu_custom_call.1} parent=11 // pred_check
          %p408 = pneg %p173
        $region34: #{tpu_custom_call.1} parent=11 // pred_check_branch
          %410 = sbr.rel (%p408) target = $region36
        $region35: #{tpu_custom_call.1} parent=11 // pred_region
          %s412 = ssub.s32 512, 512
          %413 = vsyncadd [#allocation7], %s412
          %s414 = sshll.u32 [#allocation8], 4
          %s415 = int_to_ptr.vmem [resolvable:$true] %s414
          %420 = dma.hbm_to_vmem [thread:$0]  %s5, 512, %s415, [#allocation7], 128, 128, 8
        $region36: #{tpu_custom_call.1} parent=11 // pred_fallthru
          _
        // Predicated region
        $region37: #{tpu_custom_call.1} parent=11 // pred_check
          %p421 = pneg %p194
        $region38: #{tpu_custom_call.1} parent=11 // pred_check_branch
          %423 = sbr.rel (%p421) target = $region40
        $region39: #{tpu_custom_call.1} parent=11 // pred_region
          %s425 = ssub.s32 512, 512
          %426 = vsyncadd [#allocation10], %s425
          %s427 = sshll.u32 [#allocation9], 4
          %s428 = int_to_ptr.vmem [resolvable:$true] %s427
          %433 = dma.hbm_to_vmem [thread:$0]  %s6, 512, %s428, [#allocation10], 128, 128, 8
        $region40: #{tpu_custom_call.1} parent=11 // pred_fallthru
          _
        // Predicated region
        $region41: #{tpu_custom_call.1} parent=11 // pred_check
          %p434 = pneg %p215
        $region42: #{tpu_custom_call.1} parent=11 // pred_check_branch
          %436 = sbr.rel (%p434) target = $region44
        $region43: #{tpu_custom_call.1} parent=11 // pred_region
          _
        $region44: #{tpu_custom_call.1} parent=11 // pred_fallthru
          _
        // Predicated region
        $region45: #{tpu_custom_call.1} parent=11 // pred_check
          %p437 = pneg %p236
        $region46: #{tpu_custom_call.1} parent=11 // pred_check_branch
          %439 = sbr.rel (%p437) target = $region48
        $region47: #{tpu_custom_call.1} parent=11 // pred_region
          %s441 = ssub.s32 16, 16
          %442 = vsyncadd [#allocation10], %s441
          %s444 = sshll.u32 [#allocation11], 4
          %s445 = int_to_ptr.vmem [resolvable:$true] %s444
          %447 = dma.hbm_to_vmem [thread:$0]  %s8, 16, %s445, [#allocation10]
        $region48: #{tpu_custom_call.1} parent=11 // pred_fallthru
          _
        // Predicated region
        $region49: #{tpu_custom_call.1} parent=11 // pred_check
          %p448 = pneg %p257
        $region50: #{tpu_custom_call.1} parent=11 // pred_check_branch
          %450 = sbr.rel (%p448) target = $region52
        $region51: #{tpu_custom_call.1} parent=11 // pred_region
          _
        $region52: #{tpu_custom_call.1} parent=11 // pred_fallthru
          _
        // Predicated region
        $region53: #{tpu_custom_call.1} parent=11 // pred_check
          %p451 = pneg %p278
        $region54: #{tpu_custom_call.1} parent=11 // pred_check_branch
          %453 = sbr.rel (%p451) target = $region56
        $region55: #{tpu_custom_call.1} parent=11 // pred_region
          %s455 = ssub.s32 512, 512
          %456 = vsyncadd [#allocation13], %s455
          %s457 = sshll.u32 [#allocation12], 4
          %s458 = int_to_ptr.vmem [resolvable:$true] %s457
          %463 = dma.hbm_to_vmem [thread:$0]  %s10, 512, %s458, [#allocation13], 128, 128, 8
        $region56: #{tpu_custom_call.1} parent=11 // pred_fallthru
          _
        // Predicated region
        $region57: #{tpu_custom_call.1} parent=11 // pred_check
          %p464 = pneg %p299
        $region58: #{tpu_custom_call.1} parent=11 // pred_check_branch
          %466 = sbr.rel (%p464) target = $region60
        $region59: #{tpu_custom_call.1} parent=11 // pred_region
          _
        $region60: #{tpu_custom_call.1} parent=11 // pred_fallthru
          _
      $region12: #{tpu_custom_call.1} parent=5 // pred_fallthru
        _
      %p467 = scmp.lt.s32.totalorder %s25, 6
      // Predicated region
      $region61: #{tpu_custom_call.1} parent=5 // pred_check
        %p468 = pneg %p467
      $region62: #{tpu_custom_call.1} parent=5 // pred_check_branch
        %470 = sbr.rel (%p468) target = $region64
      $region63: #{tpu_custom_call.1} parent=5 // pred_region
        _
      $region64: #{tpu_custom_call.1} parent=5 // pred_fallthru
        _
      %p471 = scmp.le.s32.totalorder 1, %s25
      %p472 = scmp.lt.s32.totalorder %s25, 7
      %p473 = pnand %p471, %p472
      %p474 = pneg %p473
      // Predicated region
      $region65: #{tpu_custom_call.1} parent=5 // pred_check
        _
      $region66: #{tpu_custom_call.1} parent=5 // pred_check_branch
        %476 = sbr.rel (%p473) target = $region68
      $region67: #{tpu_custom_call.1} parent=5 // pred_region
        %s477 = ssub.s32 %s25, 1
        // Predicated region
        $region69: #{tpu_custom_call.1} parent=67 // pred_check
          %p478 = pneg %p63
        $region70: #{tpu_custom_call.1} parent=67 // pred_check_branch
          %480 = sbr.rel (%p478) target = $region72
        $region71: #{tpu_custom_call.1} parent=67 // pred_region
          %481 = dma.done [#allocation4], 256
        $region72: #{tpu_custom_call.1} parent=67 // pred_fallthru
          _
        // Predicated region
        $region73: #{tpu_custom_call.1} parent=67 // pred_check
          %p482 = pneg %p131
        $region74: #{tpu_custom_call.1} parent=67 // pred_check_branch
          %484 = sbr.rel (%p482) target = $region76
        $region75: #{tpu_custom_call.1} parent=67 // pred_region
          %485 = dma.done [#allocation7], 512
        $region76: #{tpu_custom_call.1} parent=67 // pred_fallthru
          _
        // Predicated region
        $region77: #{tpu_custom_call.1} parent=67 // pred_check
          %p486 = pneg %p173
        $region78: #{tpu_custom_call.1} parent=67 // pred_check_branch
          %488 = sbr.rel (%p486) target = $region80
        $region79: #{tpu_custom_call.1} parent=67 // pred_region
          %489 = dma.done [#allocation7], 512
        $region80: #{tpu_custom_call.1} parent=67 // pred_fallthru
          _
        // Predicated region
        $region81: #{tpu_custom_call.1} parent=67 // pred_check
          %p490 = pneg %p194
        $region82: #{tpu_custom_call.1} parent=67 // pred_check_branch
          %492 = sbr.rel (%p490) target = $region84
        $region83: #{tpu_custom_call.1} parent=67 // pred_region
          %493 = dma.done [#allocation10], 512
        $region84: #{tpu_custom_call.1} parent=67 // pred_fallthru
          _
        // Predicated region
        $region85: #{tpu_custom_call.1} parent=67 // pred_check
          %p494 = pneg %p236
        $region86: #{tpu_custom_call.1} parent=67 // pred_check_branch
          %496 = sbr.rel (%p494) target = $region88
        $region87: #{tpu_custom_call.1} parent=67 // pred_region
          %497 = dma.done [#allocation10], 16
        $region88: #{tpu_custom_call.1} parent=67 // pred_fallthru
          _
        // Predicated region
        $region89: #{tpu_custom_call.1} parent=67 // pred_check
          %p498 = pneg %p278
        $region90: #{tpu_custom_call.1} parent=67 // pred_check_branch
          %500 = sbr.rel (%p498) target = $region92
        $region91: #{tpu_custom_call.1} parent=67 // pred_region
          %501 = dma.done [#allocation13], 512
        $region92: #{tpu_custom_call.1} parent=67 // pred_fallthru
          _
        %p502 = pneg %p63
        %p503 = pneg %p60
        %p504 = scmp.lt.s32.totalorder %s34, 0
        %s505 = scalar_select %p504, %s34, 0
        %s506 = smul.addr %s505, 2
        %s507 = scalar_lea.vmem %s1, %s506
        %p508 = pneg %p89
        %p509 = pneg %p86
        %p510 = pneg %p110
        %p511 = pneg %p107
        %p512 = pneg %p131
        %p513 = pneg %p128
        %p514 = pneg %p152
        %p515 = pneg %p149
        %p516 = pneg %p173
        %p517 = pneg %p170
        %p518 = pneg %p194
        %p519 = pneg %p191
        %p520 = pneg %p215
        %p521 = pneg %p212
        %p522 = pneg %p236
        %p523 = pneg %p233
        %p524 = pneg %p257
        %p525 = pneg %p254
        %p526 = pneg %p278
        %p527 = pneg %p275
        %p528 = pneg %p299
        %p529 = pneg %p296
        %p530 = pneg %p325
        %p531 = pneg %p322
        %s532 = smul.u32 2, %s34
        %p533 = scmp.lt.s32.totalorder %s532, 1
        %s534 = scalar_select %p533, %s532, 1
        %s535 = smul.addr %s534, 8
        %s536 = scalar_lea.vmem %s12, %s535
        %p537 = pneg %p351
        %p538 = pneg %p348
        %s539 = smul.u32 2, %s34
        %p540 = scmp.lt.s32.totalorder %s34, 0
        %s541 = scalar_select %p540, %s34, 0
        %s542 = smul.addr %s541, 2
        %s543 = scalar_lea.vmem %s1, %s542
        %s544 = smul.u32 2, %s34
        %p545 = scmp.lt.s32.totalorder %s544, 1
        %s546 = scalar_select %p545, %s544, 1
        %s547 = smul.addr %s546, 8
        %s548 = scalar_lea.vmem %s12, %s547
        %s549 = smul.u32 2, %s34
        %p550 = scmp.eq.s32.totalorder %s35, 0
        // Predicated region
        $region93: #{tpu_custom_call.1} parent=67 // pred_check
          %p551 = pneg %p550
        $region94: #{tpu_custom_call.1} parent=67 // pred_check_branch
          %553 = sbr.rel (%p551) target = $region96
        $region95: #{tpu_custom_call.1} parent=67 // pred_region
          %v554 = vld [vmem:[%s543] sm:$0x3]
          %vm555 = vcmask 254976
          %556 = vst.msk [vmem:[#allocation14] sm:$0x3] %vm555, %v554
          %v557 = vld [vmem:[#allocation3] sm:$0xff]
          %v558 = vld [vmem:[#allocation3 + $0x8] sm:$0xff]
          %v559 = vld [vmem:[#allocation6] sm:$0xff]
          %v560 = vld [vmem:[#allocation6 + $0x8] sm:$0xff]
          %v561 = vld [vmem:[#allocation6 + $0x10] sm:$0xff]
          %v562 = vld [vmem:[#allocation6 + $0x18] sm:$0xff]
          %vm563 = vcmask 261120
          %v565 = vsel %vm563, %v557, 0
          %v568 = vsel %vm563, %v558, 0
          %570 = vmatprep.subr.mxu0 0.0
          %571 = vmatpush1.msra.mxu0 %v559
          %572 = vmatprep.subr.mxu0 0.0
          %573 = vmatpush1.msra.mxu0 %v560
          %574 = vmatprep.subr.mxu0 0.0
          %575 = vmatpush1.msra.mxu0 %v561
          %576 = vmatprep.subr.mxu0 0.0
          %577 = vmatpush1.msra.mxu0 %v562
          %578 = vmatprep.subr.mxu0 0.0
          %579 = vmatpush1.msra.mxu0 0.0
          %580 = vmatprep.subr.mxu0 0.0
          %581 = vmatpush1.msra.mxu0 0.0
          %582 = vmatprep.subr.mxu0 0.0
          %583 = vmatpush1.msra.mxu0 0.0
          %584 = vmatprep.subr.mxu0 0.0
          %585 = vmatpush1.msra.mxu0 0.0
          %586 = vmatprep.subr.mxu0 0.0
          %587 = vmatpush1.msra.mxu0 0.0
          %588 = vmatprep.subr.mxu0 0.0
          %589 = vmatpush1.msra.mxu0 0.0
          %590 = vmatprep.subr.mxu0 0.0
          %591 = vmatpush1.msra.mxu0 0.0
          %592 = vmatprep.subr.mxu0 0.0
          %593 = vmatpush1.msra.mxu0 0.0
          %594 = vmatprep.subr.mxu0 0.0
          %595 = vmatpush1.msra.mxu0 0.0
          %596 = vmatprep.subr.mxu0 0.0
          %597 = vmatpush1.msra.mxu0 0.0
          %598 = vmatprep.subr.mxu0 0.0
          %599 = vmatpush1.msra.mxu0 0.0
          %600 = vmatprep.subr.mxu0 0.0
          %601 = vmatpush1.msra.mxu0 0.0
          %602 = vmatprep.subr.mxu0 0.0
          %603 = vmatpush1.msra.mxu0 0.0
          %604 = vmatprep.subr.mxu0 0.0
          %605 = vmatpush1.msra.mxu0 0.0
          %606 = vmatprep.subr.mxu0 0.0
          %607 = vmatpush1.msra.mxu0 0.0
          %608 = vmatprep.subr.mxu0 0.0
          %609 = vmatpush1.msra.mxu0 0.0
          %610 = vmatprep.subr.mxu0 0.0
          %611 = vmatpush1.msra.mxu0 0.0
          %612 = vmatprep.subr.mxu0 0.0
          %613 = vmatpush1.msra.mxu0 0.0
          %614 = vmatprep.subr.mxu0 0.0
          %615 = vmatpush1.msra.mxu0 0.0
          %616 = vmatprep.subr.mxu0 0.0
          %617 = vmatpush1.msra.mxu0 0.0
          %618 = vmatprep.subr.mxu0 0.0
          %619 = vmatpush1.msra.mxu0 0.0
          %620 = vmatprep.subr.mxu0 0.0
          %621 = vmatpush1.msra.mxu0 0.0
          %622 = vmatprep.subr.mxu0 0.0
          %623 = vmatpush1.msra.mxu0 0.0
          %624 = vmatprep.subr.mxu0 0.0
          %625 = vmatpush1.msra.mxu0 0.0
          %626 = vmatprep.subr.mxu0 0.0
          %627 = vmatpush1.msra.mxu0 0.0
          %628 = vmatprep.subr.mxu0 0.0
          %629 = vmatpush1.msra.mxu0 0.0
          %630 = vmatprep.subr.mxu0 0.0
          %631 = vmatpush1.msra.mxu0 0.0
          %632 = vmatprep.subr.mxu0 0.0
          %633 = vmatpush1.msra.mxu0 0.0
          %634 = vmatprep.mubr.f32.mxu0 0.0
          %635 = vmatmul.mubr.f32.gmra.mrb[0].mxu0 %v565
          %v636 = vpop.f32.mrb[0].mxu0
          %v637 = vadd.f32 0.0, %v636
          %v638 = vpop.f32.mrb[0].mxu0
          %639 = vmatprep.mubr.f32.mxu0 0.0
          %640 = vmatmul.mubr.f32.gmra.mrb[0].mxu0 %v568
          %v641 = vpop.f32.mrb[0].mxu0
          %v642 = vadd.f32 0.0, %v641
          %v643 = vpop.f32.mrb[0].mxu0
          %644 = vdwg.mxu0
          %645 = vst.msk [vmem:[#allocation2] sm:$0xff] %vm563, %v637
          %646 = vst.msk [vmem:[#allocation2 + $0x8] sm:$0xff] %vm563, %v642
        $region96: #{tpu_custom_call.1} parent=67 // pred_fallthru
          _
        %v647 = vld [vmem:[#allocation14] sm:$0x3]
        %v648 = vld [vmem:[%s2] sm:$0xff]
        %v649 = vld [vmem:[%s2 + $0x8] sm:$0xff]
        %v650 = vld [vmem:[%s2 + $0x10] sm:$0xff]
        %v651 = vld [vmem:[%s2 + $0x18] sm:$0xff]
        %vm652 = vcmask 261120
        %v654 = vsel %vm652, %v647, 0
        %656 = vmatprep.subr.mxu0 0.0
        %657 = vmatpush1.msra.mxu0 %v648
        %658 = vmatprep.subr.mxu0 0.0
        %659 = vmatpush1.msra.mxu0 %v649
        %660 = vmatprep.subr.mxu0 0.0
        %661 = vmatpush1.msra.mxu0 %v650
        %662 = vmatprep.subr.mxu0 0.0
        %663 = vmatpush1.msra.mxu0 %v651
        %664 = vmatprep.subr.mxu0 0.0
        %665 = vmatpush1.msra.mxu0 0.0
        %666 = vmatprep.subr.mxu0 0.0
        %667 = vmatpush1.msra.mxu0 0.0
        %668 = vmatprep.subr.mxu0 0.0
        %669 = vmatpush1.msra.mxu0 0.0
        %670 = vmatprep.subr.mxu0 0.0
        %671 = vmatpush1.msra.mxu0 0.0
        %672 = vmatprep.subr.mxu0 0.0
        %673 = vmatpush1.msra.mxu0 0.0
        %674 = vmatprep.subr.mxu0 0.0
        %675 = vmatpush1.msra.mxu0 0.0
        %676 = vmatprep.subr.mxu0 0.0
        %677 = vmatpush1.msra.mxu0 0.0
        %678 = vmatprep.subr.mxu0 0.0
        %679 = vmatpush1.msra.mxu0 0.0
        %680 = vmatprep.subr.mxu0 0.0
        %681 = vmatpush1.msra.mxu0 0.0
        %682 = vmatprep.subr.mxu0 0.0
        %683 = vmatpush1.msra.mxu0 0.0
        %684 = vmatprep.subr.mxu0 0.0
        %685 = vmatpush1.msra.mxu0 0.0
        %686 = vmatprep.subr.mxu0 0.0
        %687 = vmatpush1.msra.mxu0 0.0
        %688 = vmatprep.subr.mxu0 0.0
        %689 = vmatpush1.msra.mxu0 0.0
        %690 = vmatprep.subr.mxu0 0.0
        %691 = vmatpush1.msra.mxu0 0.0
        %692 = vmatprep.subr.mxu0 0.0
        %693 = vmatpush1.msra.mxu0 0.0
        %694 = vmatprep.subr.mxu0 0.0
        %695 = vmatpush1.msra.mxu0 0.0
        %696 = vmatprep.subr.mxu0 0.0
        %697 = vmatpush1.msra.mxu0 0.0
        %698 = vmatprep.subr.mxu0 0.0
        %699 = vmatpush1.msra.mxu0 0.0
        %700 = vmatprep.subr.mxu0 0.0
        %701 = vmatpush1.msra.mxu0 0.0
        %702 = vmatprep.subr.mxu0 0.0
        %703 = vmatpush1.msra.mxu0 0.0
        %704 = vmatprep.subr.mxu0 0.0
        %705 = vmatpush1.msra.mxu0 0.0
        %706 = vmatprep.subr.mxu0 0.0
        %707 = vmatpush1.msra.mxu0 0.0
        %708 = vmatprep.subr.mxu0 0.0
        %709 = vmatpush1.msra.mxu0 0.0
        %710 = vmatprep.subr.mxu0 0.0
        %711 = vmatpush1.msra.mxu0 0.0
        %712 = vmatprep.subr.mxu0 0.0
        %713 = vmatpush1.msra.mxu0 0.0
        %714 = vmatprep.subr.mxu0 0.0
        %715 = vmatpush1.msra.mxu0 0.0
        %716 = vmatprep.subr.mxu0 0.0
        %717 = vmatpush1.msra.mxu0 0.0
        %718 = vmatprep.subr.mxu0 0.0
        %719 = vmatpush1.msra.mxu0 0.0
        %720 = vmatprep.mubr.f32.mxu0 0.0
        %721 = vmatmul.mubr.f32.gmra.mrb[0].mxu0 %v654
        %v722 = vpop.f32.mrb[0].mxu0
        %v723 = vadd.f32 0.0, %v722
        %v724 = vpop.f32.mrb[0].mxu0
        %725 = vdwg.mxu0
        %v726 = vld [vmem:[#allocation2] sm:$0xff]
        %v727 = vld [vmem:[#allocation2 + $0x8] sm:$0xff]
        %v730 = vunpack.c.l.s4 1966171168
        %v731 = vunpack.c.0.s8 %v730
        %v732 = vlaneseq
        %v733 = vshrl.u32 %v732, 7
        %v734 = vsub.s32 %v731, %v733
        %v735 = vrot.slane %v723, %v734
        %v736 = vcombine.high %v735, %v735
        %v738 = vunpack.c.l.s4 1966171168
        %v739 = vunpack.c.0.s8 %v738
        %v740 = vlaneseq
        %v741 = vshrl.u32 %v740, 7
        %v742 = vsub.s32 %v739, %v741
        %v743 = vrot.slane %v735, %v742
        %v745 = vunpack.c.l.s4 1966171168
        %v746 = vunpack.c.0.s8 %v745
        %v747 = vlaneseq
        %v748 = vshrl.u32 %v747, 7
        %v749 = vsub.s32 %v746, %v748
        %v750 = vrot.slane %v736, %v749
        %v751 = vlaneseq
        %v752 = vshrl.u32 %v751, 7
        %v753 = vsub.s32 0, %v752
        %v754 = vrot.slane %v743, %v753
        %v755 = vlaneseq
        %v756 = vshrl.u32 %v755, 7
        %v757 = vsub.s32 0, %v756
        %v758 = vrot.slane %v750, %v757
        %v761 = vadd.f32 %v726, %v754
        %v762 = vadd.f32 %v727, %v758
        %v763 = vtanh.pop %v761
        %v764 = vtanh.pop %v762
        %v765 = vld [vmem:[%s4] sm:$0xff]
        %v766 = vld [vmem:[%s4 + $0x8] sm:$0xff]
        %v767 = vld [vmem:[%s4 + $0x10] sm:$0xff]
        %v768 = vld [vmem:[%s4 + $0x18] sm:$0xff]
        %v770 = vsel %vm652, %v763, 0
        %v773 = vsel %vm652, %v764, 0
        %775 = vmatprep.subr.mxu0 0.0
        %776 = vmatpush1.msra.mxu0 %v765
        %777 = vmatprep.subr.mxu0 0.0
        %778 = vmatpush1.msra.mxu0 %v766
        %779 = vmatprep.subr.mxu0 0.0
        %780 = vmatpush1.msra.mxu0 %v767
        %781 = vmatprep.subr.mxu0 0.0
        %782 = vmatpush1.msra.mxu0 %v768
        %783 = vmatprep.subr.mxu0 0.0
        %784 = vmatpush1.msra.mxu0 0.0
        %785 = vmatprep.subr.mxu0 0.0
        %786 = vmatpush1.msra.mxu0 0.0
        %787 = vmatprep.subr.mxu0 0.0
        %788 = vmatpush1.msra.mxu0 0.0
        %789 = vmatprep.subr.mxu0 0.0
        %790 = vmatpush1.msra.mxu0 0.0
        %791 = vmatprep.subr.mxu0 0.0
        %792 = vmatpush1.msra.mxu0 0.0
        %793 = vmatprep.subr.mxu0 0.0
        %794 = vmatpush1.msra.mxu0 0.0
        %795 = vmatprep.subr.mxu0 0.0
        %796 = vmatpush1.msra.mxu0 0.0
        %797 = vmatprep.subr.mxu0 0.0
        %798 = vmatpush1.msra.mxu0 0.0
        %799 = vmatprep.subr.mxu0 0.0
        %800 = vmatpush1.msra.mxu0 0.0
        %801 = vmatprep.subr.mxu0 0.0
        %802 = vmatpush1.msra.mxu0 0.0
        %803 = vmatprep.subr.mxu0 0.0
        %804 = vmatpush1.msra.mxu0 0.0
        %805 = vmatprep.subr.mxu0 0.0
        %806 = vmatpush1.msra.mxu0 0.0
        %807 = vmatprep.subr.mxu0 0.0
        %808 = vmatpush1.msra.mxu0 0.0
        %809 = vmatprep.subr.mxu0 0.0
        %810 = vmatpush1.msra.mxu0 0.0
        %811 = vmatprep.subr.mxu0 0.0
        %812 = vmatpush1.msra.mxu0 0.0
        %813 = vmatprep.subr.mxu0 0.0
        %814 = vmatpush1.msra.mxu0 0.0
        %815 = vmatprep.subr.mxu0 0.0
        %816 = vmatpush1.msra.mxu0 0.0
        %817 = vmatprep.subr.mxu0 0.0
        %818 = vmatpush1.msra.mxu0 0.0
        %819 = vmatprep.subr.mxu0 0.0
        %820 = vmatpush1.msra.mxu0 0.0
        %821 = vmatprep.subr.mxu0 0.0
        %822 = vmatpush1.msra.mxu0 0.0
        %823 = vmatprep.subr.mxu0 0.0
        %824 = vmatpush1.msra.mxu0 0.0
        %825 = vmatprep.subr.mxu0 0.0
        %826 = vmatpush1.msra.mxu0 0.0
        %827 = vmatprep.subr.mxu0 0.0
        %828 = vmatpush1.msra.mxu0 0.0
        %829 = vmatprep.subr.mxu0 0.0
        %830 = vmatpush1.msra.mxu0 0.0
        %831 = vmatprep.subr.mxu0 0.0
        %832 = vmatpush1.msra.mxu0 0.0
        %833 = vmatprep.subr.mxu0 0.0
        %834 = vmatpush1.msra.mxu0 0.0
        %835 = vmatprep.subr.mxu0 0.0
        %836 = vmatpush1.msra.mxu0 0.0
        %837 = vmatprep.subr.mxu0 0.0
        %838 = vmatpush1.msra.mxu0 0.0
        %839 = vmatprep.mubr.f32.mxu0 0.0
        %840 = vmatmul.mubr.f32.gmra.mrb[0].mxu0 %v770
        %v841 = vpop.f32.mrb[0].mxu0
        %v842 = vadd.f32 0.0, %v841
        %v843 = vpop.f32.mrb[0].mxu0
        %844 = vmatprep.mubr.f32.mxu0 0.0
        %845 = vmatmul.mubr.f32.gmra.mrb[0].mxu0 %v773
        %v846 = vpop.f32.mrb[0].mxu0
        %v847 = vadd.f32 0.0, %v846
        %v848 = vpop.f32.mrb[0].mxu0
        %849 = vdwg.mxu0
        %852 = vset.pattern.permute.xlu0 0
        %853 = vperm.xlu0 %852, %v842
        %v854 = vpop.permute.xlu0 %853
        %855 = vset.pattern.permute.xlu0 0
        %856 = vperm.xlu0 %855, %v847
        %v857 = vpop.permute.xlu0 %856
        %v858 = vlaneseq
        %v859 = vand.u32 %v858, 127
        %v860 = vlaneseq
        %v861 = vshrl.u32 %v860, 7
        %v862 = vsub.s32 %v859, %v861
        %v863 = vrot.slane %v854, %v862
        %v864 = vlaneseq
        %v865 = vshrl.u32 %v864, 7
        %v866 = vsub.s32 %v859, %v865
        %v867 = vrot.slane %v857, %v866
        %vm868 = vcmask 1041409
        %v869 = vsel %vm868, %v867, %v863
        %vm871 = vcmask 58368
        %v872 = vsel %vm871, %v869, -inf
        %873 = vmax.xlane.f32.xlu0 %v872
        %v874 = vpop.xlane.xlu0 %873
        %v876 = vlaneseq
        %v877 = vshrl.u32 %v876, 7
        %v878 = vsub.s32 0, %v877
        %v879 = vrot.slane %v874, %v878
        %v880 = vlaneseq
        %v881 = vshrl.u32 %v880, 7
        %v882 = vsub.s32 1, %v881
        %v883 = vrot.slane %v874, %v882
        %v886 = vsub.f32 %v842, %v879
        %v887 = vsub.f32 %v847, %v883
        %v888 = vmul.f32 %v886, 1.442695
        %v889 = vpow.pop %v888
        %v890 = vmul.f32 %v887, 1.442695
        %v891 = vpow.pop %v890
        %894 = vset.pattern.permute.xlu0 0
        %895 = vperm.xlu0 %894, %v889
        %v896 = vpop.permute.xlu0 %895
        %897 = vset.pattern.permute.xlu0 0
        %898 = vperm.xlu0 %897, %v891
        %v899 = vpop.permute.xlu0 %898
        %v900 = vlaneseq
        %v901 = vshrl.u32 %v900, 7
        %v902 = vsub.s32 %v859, %v901
        %v903 = vrot.slane %v896, %v902
        %v904 = vlaneseq
        %v905 = vshrl.u32 %v904, 7
        %v906 = vsub.s32 %v859, %v905
        %v907 = vrot.slane %v899, %v906
        %v908 = vsel %vm868, %v907, %v903
        %v910 = vsel %vm871, %v908, 0.0
        %911 = vadd.xlane.f32.xlu0 %v910
        %v912 = vpop.xlane.xlu0 %911
        %v914 = vlaneseq
        %v915 = vshrl.u32 %v914, 7
        %v916 = vsub.s32 0, %v915
        %v917 = vrot.slane %v912, %v916
        %v918 = vlaneseq
        %v919 = vshrl.u32 %v918, 7
        %v920 = vsub.s32 1, %v919
        %v921 = vrot.slane %v912, %v920
        %v924 = vrcp.pop %v917
        %v925 = vmul.f32 %v889, %v924
        %v926 = vrcp.pop %v921
        %v927 = vmul.f32 %v891, %v926
        %v928 = vld [vmem:[#allocation3] sm:$0xff]
        %v929 = vld [vmem:[#allocation3 + $0x8] sm:$0xff]
        %931 = vset.pattern.permute.xlu0 0
        %932 = vperm.xlu0 %931, %v925
        %v933 = vpop.permute.xlu0 %932
        %936 = vset.pattern.permute.xlu0 0
        %937 = vperm.xlu0 %936, %v927
        %v938 = vpop.permute.xlu0 %937
        %v940 = vmul.f32 %v933, %v928
        %v941 = vmul.f32 %v938, %v929
        %v942 = vsel %vm652, %v940, 0.0
        %v943 = vrot.slane %v942, 4
        %v944 = vadd.f32 %v942, %v943
        %v945 = vrot.slane %v944, 2
        %v946 = vadd.f32 %v944, %v945
        %v947 = vrot.slane %v946, 1
        %v948 = vadd.f32 %v946, %v947
        %v949 = vsel %vm652, %v941, 0.0
        %v950 = vrot.slane %v949, 4
        %v951 = vadd.f32 %v949, %v950
        %v952 = vrot.slane %v951, 2
        %v953 = vadd.f32 %v951, %v952
        %v954 = vrot.slane %v953, 1
        %v955 = vadd.f32 %v953, %v954
        %v956 = vld [vmem:[#allocation8] sm:$0xff]
        %v957 = vld [vmem:[#allocation8 + $0x8] sm:$0xff]
        %v958 = vld [vmem:[#allocation8 + $0x10] sm:$0xff]
        %v959 = vld [vmem:[#allocation8 + $0x18] sm:$0xff]
        %v960 = vld [vmem:[%s7] sm:$0x1]
        %v962 = vlaneseq
        %v963 = vshrl.u32 %v962, 7
        %v964 = vsub.s32 0, %v963
        %v965 = vrot.slane %v960, %v964
        %v969 = vsel %vm868, %v955, %v948
        %v970 = vsel %vm652, %v969, 0
        %972 = vmatprep.subr.mxu0 0.0
        %973 = vmatpush1.msra.mxu0 %v956
        %974 = vmatprep.subr.mxu0 0.0
        %975 = vmatpush1.msra.mxu0 %v957
        %976 = vmatprep.subr.mxu0 0.0
        %977 = vmatpush1.msra.mxu0 %v958
        %978 = vmatprep.subr.mxu0 0.0
        %979 = vmatpush1.msra.mxu0 %v959
        %980 = vmatprep.subr.mxu0 0.0
        %981 = vmatpush1.msra.mxu0 0.0
        %982 = vmatprep.subr.mxu0 0.0
        %983 = vmatpush1.msra.mxu0 0.0
        %984 = vmatprep.subr.mxu0 0.0
        %985 = vmatpush1.msra.mxu0 0.0
        %986 = vmatprep.subr.mxu0 0.0
        %987 = vmatpush1.msra.mxu0 0.0
        %988 = vmatprep.subr.mxu0 0.0
        %989 = vmatpush1.msra.mxu0 0.0
        %990 = vmatprep.subr.mxu0 0.0
        %991 = vmatpush1.msra.mxu0 0.0
        %992 = vmatprep.subr.mxu0 0.0
        %993 = vmatpush1.msra.mxu0 0.0
        %994 = vmatprep.subr.mxu0 0.0
        %995 = vmatpush1.msra.mxu0 0.0
        %996 = vmatprep.subr.mxu0 0.0
        %997 = vmatpush1.msra.mxu0 0.0
        %998 = vmatprep.subr.mxu0 0.0
        %999 = vmatpush1.msra.mxu0 0.0
        %1000 = vmatprep.subr.mxu0 0.0
        %1001 = vmatpush1.msra.mxu0 0.0
        %1002 = vmatprep.subr.mxu0 0.0
        %1003 = vmatpush1.msra.mxu0 0.0
        %1004 = vmatprep.subr.mxu0 0.0
        %1005 = vmatpush1.msra.mxu0 0.0
        %1006 = vmatprep.subr.mxu0 0.0
        %1007 = vmatpush1.msra.mxu0 0.0
        %1008 = vmatprep.subr.mxu0 0.0
        %1009 = vmatpush1.msra.mxu0 0.0
        %1010 = vmatprep.subr.mxu0 0.0
        %1011 = vmatpush1.msra.mxu0 0.0
        %1012 = vmatprep.subr.mxu0 0.0
        %1013 = vmatpush1.msra.mxu0 0.0
        %1014 = vmatprep.subr.mxu0 0.0
        %1015 = vmatpush1.msra.mxu0 0.0
        %1016 = vmatprep.subr.mxu0 0.0
        %1017 = vmatpush1.msra.mxu0 0.0
        %1018 = vmatprep.subr.mxu0 0.0
        %1019 = vmatpush1.msra.mxu0 0.0
        %1020 = vmatprep.subr.mxu0 0.0
        %1021 = vmatpush1.msra.mxu0 0.0
        %1022 = vmatprep.subr.mxu0 0.0
        %1023 = vmatpush1.msra.mxu0 0.0
        %1024 = vmatprep.subr.mxu0 0.0
        %1025 = vmatpush1.msra.mxu0 0.0
        %1026 = vmatprep.subr.mxu0 0.0
        %1027 = vmatpush1.msra.mxu0 0.0
        %1028 = vmatprep.subr.mxu0 0.0
        %1029 = vmatpush1.msra.mxu0 0.0
        %1030 = vmatprep.subr.mxu0 0.0
        %1031 = vmatpush1.msra.mxu0 0.0
        %1032 = vmatprep.subr.mxu0 0.0
        %1033 = vmatpush1.msra.mxu0 0.0
        %1034 = vmatprep.subr.mxu0 0.0
        %1035 = vmatpush1.msra.mxu0 0.0
        %1036 = vmatprep.mubr.f32.mxu0 0.0
        %1037 = vmatmul.mubr.f32.gmra.mrb[0].mxu0 %v970
        %v1038 = vpop.f32.mrb[0].mxu0
        %v1039 = vadd.f32 %v965, %v1038
        %v1040 = vpop.f32.mrb[0].mxu0
        %1041 = vdwg.mxu0
        %v1042 = vld [vmem:[#allocation9] sm:$0xff]
        %v1043 = vld [vmem:[#allocation9 + $0x8] sm:$0xff]
        %v1044 = vld [vmem:[#allocation9 + $0x10] sm:$0xff]
        %v1045 = vld [vmem:[#allocation9 + $0x18] sm:$0xff]
        %1046 = vmatprep.subr.mxu0 0.0
        %1047 = vmatpush1.msra.mxu0 %v1042
        %1048 = vmatprep.subr.mxu0 0.0
        %1049 = vmatpush1.msra.mxu0 %v1043
        %1050 = vmatprep.subr.mxu0 0.0
        %1051 = vmatpush1.msra.mxu0 %v1044
        %1052 = vmatprep.subr.mxu0 0.0
        %1053 = vmatpush1.msra.mxu0 %v1045
        %1054 = vmatprep.subr.mxu0 0.0
        %1055 = vmatpush1.msra.mxu0 0.0
        %1056 = vmatprep.subr.mxu0 0.0
        %1057 = vmatpush1.msra.mxu0 0.0
        %1058 = vmatprep.subr.mxu0 0.0
        %1059 = vmatpush1.msra.mxu0 0.0
        %1060 = vmatprep.subr.mxu0 0.0
        %1061 = vmatpush1.msra.mxu0 0.0
        %1062 = vmatprep.subr.mxu0 0.0
        %1063 = vmatpush1.msra.mxu0 0.0
        %1064 = vmatprep.subr.mxu0 0.0
        %1065 = vmatpush1.msra.mxu0 0.0
        %1066 = vmatprep.subr.mxu0 0.0
        %1067 = vmatpush1.msra.mxu0 0.0
        %1068 = vmatprep.subr.mxu0 0.0
        %1069 = vmatpush1.msra.mxu0 0.0
        %1070 = vmatprep.subr.mxu0 0.0
        %1071 = vmatpush1.msra.mxu0 0.0
        %1072 = vmatprep.subr.mxu0 0.0
        %1073 = vmatpush1.msra.mxu0 0.0
        %1074 = vmatprep.subr.mxu0 0.0
        %1075 = vmatpush1.msra.mxu0 0.0
        %1076 = vmatprep.subr.mxu0 0.0
        %1077 = vmatpush1.msra.mxu0 0.0
        %1078 = vmatprep.subr.mxu0 0.0
        %1079 = vmatpush1.msra.mxu0 0.0
        %1080 = vmatprep.subr.mxu0 0.0
        %1081 = vmatpush1.msra.mxu0 0.0
        %1082 = vmatprep.subr.mxu0 0.0
        %1083 = vmatpush1.msra.mxu0 0.0
        %1084 = vmatprep.subr.mxu0 0.0
        %1085 = vmatpush1.msra.mxu0 0.0
        %1086 = vmatprep.subr.mxu0 0.0
        %1087 = vmatpush1.msra.mxu0 0.0
        %1088 = vmatprep.subr.mxu0 0.0
        %1089 = vmatpush1.msra.mxu0 0.0
        %1090 = vmatprep.subr.mxu0 0.0
        %1091 = vmatpush1.msra.mxu0 0.0
        %1092 = vmatprep.subr.mxu0 0.0
        %1093 = vmatpush1.msra.mxu0 0.0
        %1094 = vmatprep.subr.mxu0 0.0
        %1095 = vmatpush1.msra.mxu0 0.0
        %1096 = vmatprep.subr.mxu0 0.0
        %1097 = vmatpush1.msra.mxu0 0.0
        %1098 = vmatprep.subr.mxu0 0.0
        %1099 = vmatpush1.msra.mxu0 0.0
        %1100 = vmatprep.subr.mxu0 0.0
        %1101 = vmatpush1.msra.mxu0 0.0
        %1102 = vmatprep.subr.mxu0 0.0
        %1103 = vmatpush1.msra.mxu0 0.0
        %1104 = vmatprep.subr.mxu0 0.0
        %1105 = vmatpush1.msra.mxu0 0.0
        %1106 = vmatprep.subr.mxu0 0.0
        %1107 = vmatpush1.msra.mxu0 0.0
        %1108 = vmatprep.subr.mxu0 0.0
        %1109 = vmatpush1.msra.mxu0 0.0
        %1110 = vmatprep.mubr.f32.mxu0 0.0
        %1111 = vmatmul.mubr.f32.gmra.mrb[0].mxu0 %v654
        %v1112 = vpop.f32.mrb[0].mxu0
        %v1113 = vadd.f32 0.0, %v1112
        %v1114 = vpop.f32.mrb[0].mxu0
        %1115 = vdwg.mxu0
        %v1116 = vadd.f32 %v1039, %v1113
        %v1117 = vxor.u32 %v1116, 2147483648
        %v1118 = vmul.f32 %v1117, 1.442695
        %v1119 = vpow.pop %v1118
        %v1120 = vadd.f32 %v1119, 1.0
        %v1121 = vrcp.pop %v1120
        %v1122 = vmul.f32 1.0, %v1121
        %v1123 = vld [vmem:[#allocation11] sm:$0x1]
        %v1125 = vlaneseq
        %v1126 = vshrl.u32 %v1125, 7
        %v1127 = vsub.s32 0, %v1126
        %v1128 = vrot.slane %v1123, %v1127
        %1129 = vrot.lane.b32.xlu0 %v1128, 64
        %v1130 = vpop.permute.xlu0 %1129
        %v1132 = vadd.f32 %v1113, %v1130
        %1134 = vrot.lane.b32.xlu0 %v1132, 64
        %v1135 = vpop.permute.xlu0 %1134
        %v1137 = vmul.f32 %v1122, %v1135
        %1139 = vrot.lane.b32.xlu0 %v1137, 64
        %v1140 = vpop.permute.xlu0 %1139
        %v1142 = vadd.f32 %v1039, %v1140
        %v1143 = vtanh.pop %v1142
        %v1144 = vsub.f32 1.0, %v1122
        %1146 = vrot.lane.b32.xlu0 %v1143, 96
        %v1147 = vpop.permute.xlu0 %1146
        %v1149 = vmul.f32 %v1144, %v1147
        %1150 = vrot.lane.b32.xlu0 %v647, 32
        %v1151 = vpop.permute.xlu0 %1150
        %v1153 = vmul.f32 %v1122, %v1151
        %v1154 = vadd.f32 %v1149, %v1153
        %v1155 = vld [vmem:[%s9] sm:$0xff]
        %v1156 = vld [vmem:[%s9 + $0x8] sm:$0xff]
        %v1157 = vld [vmem:[%s9 + $0x10] sm:$0xff]
        %v1158 = vld [vmem:[%s9 + $0x18] sm:$0xff]
        %v1159 = vld [vmem:[#allocation12] sm:$0xff]
        %v1160 = vld [vmem:[#allocation12 + $0x8] sm:$0xff]
        %v1161 = vld [vmem:[#allocation12 + $0x10] sm:$0xff]
        %v1162 = vld [vmem:[#allocation12 + $0x18] sm:$0xff]
        %1163 = vmatprep.subr.mxu0 0.0
        %1164 = vmatpush1.msra.mxu0 %v1159
        %1165 = vmatprep.subr.mxu0 0.0
        %1166 = vmatpush1.msra.mxu0 %v1160
        %1167 = vmatprep.subr.mxu0 0.0
        %1168 = vmatpush1.msra.mxu0 %v1161
        %1169 = vmatprep.subr.mxu0 0.0
        %1170 = vmatpush1.msra.mxu0 %v1162
        %1171 = vmatprep.subr.mxu0 0.0
        %1172 = vmatpush1.msra.mxu0 0.0
        %1173 = vmatprep.subr.mxu0 0.0
        %1174 = vmatpush1.msra.mxu0 0.0
        %1175 = vmatprep.subr.mxu0 0.0
        %1176 = vmatpush1.msra.mxu0 0.0
        %1177 = vmatprep.subr.mxu0 0.0
        %1178 = vmatpush1.msra.mxu0 0.0
        %1179 = vmatprep.subr.mxu0 0.0
        %1180 = vmatpush1.msra.mxu0 0.0
        %1181 = vmatprep.subr.mxu0 0.0
        %1182 = vmatpush1.msra.mxu0 0.0
        %1183 = vmatprep.subr.mxu0 0.0
        %1184 = vmatpush1.msra.mxu0 0.0
        %1185 = vmatprep.subr.mxu0 0.0
        %1186 = vmatpush1.msra.mxu0 0.0
        %1187 = vmatprep.subr.mxu0 0.0
        %1188 = vmatpush1.msra.mxu0 0.0
        %1189 = vmatprep.subr.mxu0 0.0
        %1190 = vmatpush1.msra.mxu0 0.0
        %1191 = vmatprep.subr.mxu0 0.0
        %1192 = vmatpush1.msra.mxu0 0.0
        %1193 = vmatprep.subr.mxu0 0.0
        %1194 = vmatpush1.msra.mxu0 0.0
        %1195 = vmatprep.subr.mxu0 0.0
        %1196 = vmatpush1.msra.mxu0 0.0
        %1197 = vmatprep.subr.mxu0 0.0
        %1198 = vmatpush1.msra.mxu0 0.0
        %1199 = vmatprep.subr.mxu0 0.0
        %1200 = vmatpush1.msra.mxu0 0.0
        %1201 = vmatprep.subr.mxu0 0.0
        %1202 = vmatpush1.msra.mxu0 0.0
        %1203 = vmatprep.subr.mxu0 0.0
        %1204 = vmatpush1.msra.mxu0 0.0
        %1205 = vmatprep.subr.mxu0 0.0
        %1206 = vmatpush1.msra.mxu0 0.0
        %1207 = vmatprep.subr.mxu0 0.0
        %1208 = vmatpush1.msra.mxu0 0.0
        %1209 = vmatprep.subr.mxu0 0.0
        %1210 = vmatpush1.msra.mxu0 0.0
        %1211 = vmatprep.subr.mxu0 0.0
        %1212 = vmatpush1.msra.mxu0 0.0
        %1213 = vmatprep.subr.mxu0 0.0
        %1214 = vmatpush1.msra.mxu0 0.0
        %1215 = vmatprep.subr.mxu0 0.0
        %1216 = vmatpush1.msra.mxu0 0.0
        %1217 = vmatprep.subr.mxu0 0.0
        %1218 = vmatpush1.msra.mxu0 0.0
        %1219 = vmatprep.subr.mxu0 0.0
        %1220 = vmatpush1.msra.mxu0 0.0
        %1221 = vmatprep.subr.mxu0 0.0
        %1222 = vmatpush1.msra.mxu0 0.0
        %1223 = vmatprep.subr.mxu0 0.0
        %1224 = vmatpush1.msra.mxu0 0.0
        %1225 = vmatprep.subr.mxu0 0.0
        %1226 = vmatpush1.msra.mxu0 0.0
        %1227 = vmatprep.mubr.f32.mxu0 0.0
        %1228 = vmatmul.mubr.f32.gmra.mrb[0].mxu0 %v970
        %v1229 = vpop.f32.mrb[0].mxu0
        %v1230 = vadd.f32 0.0, %v1229
        %v1231 = vpop.f32.mrb[0].mxu0
        %1232 = vdwg.mxu0
        %1234 = vrot.lane.b32.xlu0 %v1154, 96
        %v1235 = vpop.permute.xlu0 %1234
        %v1236 = vsel %vm652, %v1235, 0
        %1238 = vmatprep.subr.mxu0 0.0
        %1239 = vmatpush1.msra.mxu0 %v1155
        %1240 = vmatprep.subr.mxu0 0.0
        %1241 = vmatpush1.msra.mxu0 %v1156
        %1242 = vmatprep.subr.mxu0 0.0
        %1243 = vmatpush1.msra.mxu0 %v1157
        %1244 = vmatprep.subr.mxu0 0.0
        %1245 = vmatpush1.msra.mxu0 %v1158
        %1246 = vmatprep.subr.mxu0 0.0
        %1247 = vmatpush1.msra.mxu0 0.0
        %1248 = vmatprep.subr.mxu0 0.0
        %1249 = vmatpush1.msra.mxu0 0.0
        %1250 = vmatprep.subr.mxu0 0.0
        %1251 = vmatpush1.msra.mxu0 0.0
        %1252 = vmatprep.subr.mxu0 0.0
        %1253 = vmatpush1.msra.mxu0 0.0
        %1254 = vmatprep.subr.mxu0 0.0
        %1255 = vmatpush1.msra.mxu0 0.0
        %1256 = vmatprep.subr.mxu0 0.0
        %1257 = vmatpush1.msra.mxu0 0.0
        %1258 = vmatprep.subr.mxu0 0.0
        %1259 = vmatpush1.msra.mxu0 0.0
        %1260 = vmatprep.subr.mxu0 0.0
        %1261 = vmatpush1.msra.mxu0 0.0
        %1262 = vmatprep.subr.mxu0 0.0
        %1263 = vmatpush1.msra.mxu0 0.0
        %1264 = vmatprep.subr.mxu0 0.0
        %1265 = vmatpush1.msra.mxu0 0.0
        %1266 = vmatprep.subr.mxu0 0.0
        %1267 = vmatpush1.msra.mxu0 0.0
        %1268 = vmatprep.subr.mxu0 0.0
        %1269 = vmatpush1.msra.mxu0 0.0
        %1270 = vmatprep.subr.mxu0 0.0
        %1271 = vmatpush1.msra.mxu0 0.0
        %1272 = vmatprep.subr.mxu0 0.0
        %1273 = vmatpush1.msra.mxu0 0.0
        %1274 = vmatprep.subr.mxu0 0.0
        %1275 = vmatpush1.msra.mxu0 0.0
        %1276 = vmatprep.subr.mxu0 0.0
        %1277 = vmatpush1.msra.mxu0 0.0
        %1278 = vmatprep.subr.mxu0 0.0
        %1279 = vmatpush1.msra.mxu0 0.0
        %1280 = vmatprep.subr.mxu0 0.0
        %1281 = vmatpush1.msra.mxu0 0.0
        %1282 = vmatprep.subr.mxu0 0.0
        %1283 = vmatpush1.msra.mxu0 0.0
        %1284 = vmatprep.subr.mxu0 0.0
        %1285 = vmatpush1.msra.mxu0 0.0
        %1286 = vmatprep.subr.mxu0 0.0
        %1287 = vmatpush1.msra.mxu0 0.0
        %1288 = vmatprep.subr.mxu0 0.0
        %1289 = vmatpush1.msra.mxu0 0.0
        %1290 = vmatprep.subr.mxu0 0.0
        %1291 = vmatpush1.msra.mxu0 0.0
        %1292 = vmatprep.subr.mxu0 0.0
        %1293 = vmatpush1.msra.mxu0 0.0
        %1294 = vmatprep.subr.mxu0 0.0
        %1295 = vmatpush1.msra.mxu0 0.0
        %1296 = vmatprep.subr.mxu0 0.0
        %1297 = vmatpush1.msra.mxu0 0.0
        %1298 = vmatprep.subr.mxu0 0.0
        %1299 = vmatpush1.msra.mxu0 0.0
        %1300 = vmatprep.subr.mxu0 0.0
        %1301 = vmatpush1.msra.mxu0 0.0
        %1302 = vmatprep.mubr.f32.mxu0 0.0
        %1303 = vmatmul.mubr.f32.gmra.mrb[0].mxu0 %v1236
        %v1304 = vpop.f32.mrb[0].mxu0
        %v1305 = vadd.f32 %v1230, %v1304
        %v1306 = vpop.f32.mrb[0].mxu0
        %1307 = vdwg.mxu0
        %v1308 = vld [vmem:[%s11] sm:$0x1]
        %v1310 = vlaneseq
        %v1311 = vshrl.u32 %v1310, 7
        %v1312 = vsub.s32 0, %v1311
        %v1313 = vrot.slane %v1308, %v1312
        %v1315 = vadd.f32 %v1305, %v1313
        %vm1317 = vcmask 254976
        %1318 = vst.msk [vmem:[#allocation14] sm:$0x3] %vm1317, %v1235
        %v1321 = vunpack.c.l.s4 1966171168
        %v1322 = vunpack.c.0.s8 %v1321
        %v1323 = vlaneseq
        %v1324 = vshrl.u32 %v1323, 7
        %v1325 = vsub.s32 %v1322, %v1324
        %v1326 = vrot.slane %v1315, %v1325
        %v1327 = vcombine.high %v1326, %v1326
        %v1329 = vunpack.c.l.s4 1966171168
        %v1330 = vunpack.c.0.s8 %v1329
        %v1331 = vlaneseq
        %v1332 = vshrl.u32 %v1331, 7
        %v1333 = vsub.s32 %v1330, %v1332
        %v1334 = vrot.slane %v1326, %v1333
        %v1336 = vunpack.c.l.s4 1966171168
        %v1337 = vunpack.c.0.s8 %v1336
        %v1338 = vlaneseq
        %v1339 = vshrl.u32 %v1338, 7
        %v1340 = vsub.s32 %v1337, %v1339
        %v1341 = vrot.slane %v1327, %v1340
        %s1344 = scalar_lea.vmem %s548, %s35
        %1345 = vst [vmem:[%s1344] sm:$0x1] %v1334
        %1346 = vst [vmem:[%s1344 + $0x8] sm:$0x1] %v1341
        %s1347 = smul.u32 2, %s34
        %p1348 = scmp.lt.s32.totalorder %s1347, 1
        %s1349 = scalar_select %p1348, %s1347, 1
        %s1350 = smul.addr %s1349, 8
        %s1351 = scalar_lea.vmem %s12, %s1350
        // Predicated region
        $region97: #{tpu_custom_call.1} parent=67 // pred_check
          %p1352 = pneg %p322
        $region98: #{tpu_custom_call.1} parent=67 // pred_check_branch
          %1354 = sbr.rel (%p1352) target = $region100
        $region99: #{tpu_custom_call.1} parent=67 // pred_region
          %s1355 = smul.u32 2, %s34
        $region100: #{tpu_custom_call.1} parent=67 // pred_fallthru
          _
        // Predicated region
        $region101: #{tpu_custom_call.1} parent=67 // pred_check
          %p1356 = pneg %p348
        $region102: #{tpu_custom_call.1} parent=67 // pred_check_branch
          %1358 = sbr.rel (%p1356) target = $region104
        $region103: #{tpu_custom_call.1} parent=67 // pred_region
          %s1360 = ssub.s32 32, 32
          %1361 = vsyncadd [#allocation5], %s1360
          %s1362 = smul.addr %s34, 32
          %s1363 = scalar_lea.hbm %s13, %s1362
          %s1365 = sshll.u32 [#allocation14], 4
          %s1366 = int_to_ptr.vmem [resolvable:$true] %s1365
          %1368 = dma.vmem_to_hbm [thread:$0]  %s1366, 32, %s1363, [#allocation5]
        $region104: #{tpu_custom_call.1} parent=67 // pred_fallthru
          _
        // Predicated region
        $region105: #{tpu_custom_call.1} parent=67 // pred_check
          %p1369 = pneg %p322
        $region106: #{tpu_custom_call.1} parent=67 // pred_check_branch
          %1371 = sbr.rel (%p1369) target = $region108
        $region107: #{tpu_custom_call.1} parent=67 // pred_region
          %s1372 = smul.u32 2, %s34
          %p1373 = scmp.lt.s32.totalorder %s1372, 1
          %s1374 = scalar_select %p1373, %s1372, 1
          %s1375 = smul.addr %s1374, 8
          %s1376 = scalar_lea.vmem %s12, %s1375
        $region108: #{tpu_custom_call.1} parent=67 // pred_fallthru
          _
        // Predicated region
        $region109: #{tpu_custom_call.1} parent=67 // pred_check
          %p1377 = pneg %p348
        $region110: #{tpu_custom_call.1} parent=67 // pred_check_branch
          %1379 = sbr.rel (%p1377) target = $region112
        $region111: #{tpu_custom_call.1} parent=67 // pred_region
          %1380 = dma.done [#allocation5], 32
        $region112: #{tpu_custom_call.1} parent=67 // pred_fallthru
          _
      $region68: #{tpu_custom_call.1} parent=5 // pred_fallthru
        _
      %p1381 = scmp.le.s32.totalorder 2, %s25
      // Predicated region
      $region113: #{tpu_custom_call.1} parent=5 // pred_check
        %p1382 = pneg %p1381
      $region114: #{tpu_custom_call.1} parent=5 // pred_check_branch
        %1384 = sbr.rel (%p1382) target = $region116
      $region115: #{tpu_custom_call.1} parent=5 // pred_region
        %s1385 = ssub.s32 %s25, 2
      $region116: #{tpu_custom_call.1} parent=5 // pred_fallthru
        _
    $region6: #{tpu_custom_call.1} parent=1 // loop_footer
      %s29 = sadd.s32 1, %s25
    $region7: #{tpu_custom_call.1} parent=1 // loop_footer_branch
      %24 = sbr.rel target = $region3
    $region8: #{tpu_custom_call.1} parent=1 // loop_exit
      _
    %1386 = vsyncpa [#allocation4], 1
    %s1387 = scalar_lea.sflag [#allocation4], 1
    %1388 = vsyncpa %s1387, 1
    %1389 = vsyncpa [#allocation7], 1
    %1390 = vsyncpa [#allocation10], 1
    %1391 = vsyncpa [#allocation13], 1
    %1392 = vsyncpa [#allocation5], 1
    %s1393 = scalar_lea.sflag [#allocation5], 1
    %1394 = vsyncpa %s1393, 1

</llo_original>
